<compile_context>
chip_gen: v5e
topology: v5e:2x2
jax: 0.10.0
libtpu: 0.0.40
codegen_flags: <defaults>
</compile_context>

<pallas_src>
import functools

import jax
import jax.numpy as jnp
import numpy as np
from jax.experimental import pallas as pl
from jax.experimental.pallas import tpu as pltpu

HIDDEN = 32                  # LSTM hidden size; bidirectional -> 64 features
LANE = 128                   # TPU lane width; also == 4 * HIDDEN
NGATES = 4
GW = NGATES * LANE           # 512 : padded gate width (each gate owns 128 lanes)
EMB_V, EMB_D = 8, 16         # nn.Embedding(8, 16) -- output is multiplied by 0 -> dead
FEAT = 2 * HIDDEN + EMB_D    # 80  : fc0 in/out features
HEAD_ROWS = 3 * LANE + 8     # 392 : rows of the packed head slab


# ----------------------------------------------------------------------------- kernel
def _lstm_model_kernel(x_ref, lstm_ref, head_hbm, out_ref, head_vmem, head_sem,
                       *, B, T):
    # Kick off the head-slab DMA immediately; it is not needed until after the
    # T-step recurrence, so its latency hides behind the serial LSTM loop.
    head_cp = pltpu.make_async_copy(head_hbm, head_vmem, head_sem)
    head_cp.start()

    # ---- unpack the LSTM slab (static, tile-aligned slices) ----
    whh_f = lstm_ref[0:LANE, :]                 # (128, 512); rows >= 32 are zero
    wih_f = lstm_ref[LANE + 0:LANE + 1, :]      # (1, 512)
    b_f = lstm_ref[LANE + 1:LANE + 2, :]        # (1, 512)  (= b_ih + b_hh, padded)
    wih_r = lstm_ref[LANE + 2:LANE + 3, :]
    b_r = lstm_ref[LANE + 3:LANE + 4, :]

    x_flat = x_ref[...]                         # (T*B, 1); row t*B + b == x[b, t]

    # Hoisted input-gate contributions + bias for ALL forward timesteps.
    xg_f = x_flat * wih_f + b_f                 # (T*B, 512)

    def gates_to_hc(gates, c_prev):
        # gate k lives in lanes [128k, 128k+32); padded lanes carry zeros, so
        # the junk lanes of h/c stay exactly 0 and never pollute real lanes.
        i = jax.nn.sigmoid(gates[:, 0 * LANE:1 * LANE])
        f = jax.nn.sigmoid(gates[:, 1 * LANE:2 * LANE])
        g = jnp.tanh(gates[:, 2 * LANE:3 * LANE])
        o = jax.nn.sigmoid(gates[:, 3 * LANE:4 * LANE])
        c = f * c_prev + i * g
        h = o * jnp.tanh(c)
        return h, c                             # (B, 128) each, lanes [0,32) real

    # ---- forward direction: full recurrence (T static -> unrolled) ----
    h, c = gates_to_hc(xg_f[0:B, :], jnp.zeros((B, LANE), jnp.float32))  # h0 = c0 = 0
    # TODO(synk): if a bundle dump shows Mosaic re-streaming whh_f every step,
    # switch to weight-stationary pltpu.matmul_push_rhs/matmul_acc_lhs/matmul_pop.
    for t in range(1, T):
        gates = xg_f[t * B:(t + 1) * B, :] + jnp.dot(
            h, whh_f, preferred_element_type=jnp.float32)
        h, c = gates_to_hc(gates, c)
    h_fwd = h                                   # (B, 128), lanes [0,32) = h_fwd[T-1]

    # ---- reverse direction ----
    # The model reads the LSTM *output* at the last original timestep, which for
    # the reverse direction is its FIRST step (zero initial state, input x[:,T-1]),
    # so a single cell evaluation (no hidden matmul) is exact.
    gates_r = x_flat[(T - 1) * B:T * B, :] * wih_r + b_r
    h_rev, _ = gates_to_hc(gates_r, jnp.zeros((B, LANE), jnp.float32))

    # ---- heads: wait for the overlapped head-slab DMA, then unpack ----
    head_cp.wait()
    w0fr = head_vmem[0:2 * LANE, :]             # (256, 128) stacked fc0 [fwd; rev]
    w12 = head_vmem[2 * LANE:3 * LANE, :]       # (128, 128) fused fc1||fc2
    b0 = head_vmem[3 * LANE + 0:3 * LANE + 1, :]
    b12 = head_vmem[3 * LANE + 1:3 * LANE + 2, :]

    # embedding(x2) * 0 == 0 exactly -> dead path removed.  fc0 on the concat is
    # one 256-deep lane-aligned matmul (padded rows/lanes are zero).
    hcat = jnp.concatenate([h_fwd, h_rev], axis=-1)          # (B, 256), two vregs
    hid = jnp.maximum(
        jnp.dot(hcat, w0fr, preferred_element_type=jnp.float32) + b0,
        0.0)                                    # (B, 128), lanes [0,80) real
    # Fused fc1 || fc2: lane 0 = out1, lanes 1..8 = out2, lanes 9.. = padding.
    out_ref[...] = jax.nn.sigmoid(
        jnp.dot(hid, w12, preferred_element_type=jnp.float32) + b12)


# ----------------------------------------------------------------------------- wrapper
def lstm_model_forward(x, x2, packed):
    """x: (B, T) float32, x2: (B, 1) int32 (unused: its embedding is zeroed)."""
    del x2  # embedding(x2) * 0 == 0 exactly; dead path removed from the kernel.
    B, T = x.shape
    # PyTorch feeds the sequence time-major; row t*B + b of x_flat is x[b, t].
    x_flat = x.T.reshape(T * B, 1).astype(jnp.float32)

    vmem = pl.BlockSpec(memory_space=pltpu.MemorySpace.VMEM)
    out = pl.pallas_call(
        functools.partial(_lstm_model_kernel, B=B, T=T),
        out_shape=jax.ShapeDtypeStruct((B, LANE), jnp.float32),
        in_specs=[vmem, vmem, pl.BlockSpec(memory_space=pl.ANY)],
        out_specs=vmem,
        scratch_shapes=[
            pltpu.VMEM((HEAD_ROWS, LANE), jnp.float32),   # head-slab landing buffer
            pltpu.SemaphoreType.DMA(()),                  # its completion semaphore
        ],
    )(x_flat, packed["lstm_slab"], packed["head_slab"])

    return out[:, 0:1], out[:, 1:9]             # (B, 1), (B, 8)


# ----------------------------------------------------------------------------- params
def init_params(key):
    """Raw parameters in PyTorch layout, all ~ U(-0.05, 0.05) (init_parameters)."""
    H = HIDDEN
    ks = jax.random.split(key, 14)
    u = lambda k, s: jax.random.uniform(k, s, jnp.float32, -0.05, 0.05)
    return dict(
        # LSTM forward / reverse direction (PyTorch shapes).
        wih_f=u(ks[0], (4 * H, 1)), whh_f=u(ks[1], (4 * H, H)),
        bih_f=u(ks[2], (4 * H,)), bhh_f=u(ks[3], (4 * H,)),
        wih_r=u(ks[4], (4 * H, 1)), whh_r=u(ks[5], (4 * H, H)),
        bih_r=u(ks[6], (4 * H,)), bhh_r=u(ks[7], (4 * H,)),
        # Heads.
        w0=u(ks[8], (FEAT, FEAT)), b0=u(ks[9], (FEAT,)),
        w1=u(ks[10], (1, FEAT)), b1=u(ks[11], (1,)),
        w2=u(ks[12], (8, FEAT)), b2=u(ks[13], (8,)),
        # nn.Embedding(8,16) weights exist in the module but only feed a `* 0`
        # path, so they are never materialized here.  (whh_r exists but the
        # reverse direction needs no hidden-state matmul -> never packed.)
    )


def _pad_gate_cols(w):
    """(rows, 4H) gate-major -> (rows, 4*LANE): gate g -> lanes [g*LANE, g*LANE+H)."""
    rows = w.shape[0]
    out = jnp.zeros((rows, GW), jnp.float32)
    for g in range(NGATES):
        out = out.at[:, g * LANE:g * LANE + HIDDEN].set(w[:, g * HIDDEN:(g + 1) * HIDDEN])
    return out


def pack_params(p):
    """Pack the live parameters into two lane-aligned slabs (3 input DMAs total,
    one of which is overlapped with compute inside the kernel)."""
    H = HIDDEN

    # ---- LSTM slab: (136, 512) = whh_f block + 8 small rows.  whh_r is dead. ----
    whh_t = jnp.pad(p["whh_f"].T, ((0, LANE - H), (0, 0)))      # (128,128), rows>=32 zero
    whhf = _pad_gate_cols(whh_t)                                # (128, 512)
    wihf = _pad_gate_cols(p["wih_f"].T)                         # (1, 512)
    bf = _pad_gate_cols((p["bih_f"] + p["bhh_f"]).reshape(1, 4 * H))
    wihr = _pad_gate_cols(p["wih_r"].T)
    br = _pad_gate_cols((p["bih_r"] + p["bhh_r"]).reshape(1, 4 * H))
    small = jnp.concatenate([wihf, bf, wihr, br,
                             jnp.zeros((4, GW), jnp.float32)], axis=0)   # (8, 512)
    lstm_slab = jnp.concatenate([whhf, small], axis=0)                   # (136, 512)

    # ---- Head slab: (392, 128) = stacked fc0 (256) + fused fc1||fc2 (128) + biases. ----
    w0t = p["w0"].T                                              # (80, 80), in -> out
    w0f = jnp.zeros((LANE, LANE), jnp.float32).at[:H, :FEAT].set(w0t[0:H, :])
    w0r = jnp.zeros((LANE, LANE), jnp.float32).at[:H, :FEAT].set(w0t[H:2 * H, :])
    # (w0t rows 64..79 multiply the zeroed embedding features -> dropped.)
    w12 = (jnp.zeros((LANE, LANE), jnp.float32)
           .at[:FEAT, 0:1].set(p["w1"].T)                        # fc1 -> lane 0
           .at[:FEAT, 1:9].set(p["w2"].T))                       # fc2 -> lanes 1..8
    b0 = jnp.zeros((1, LANE), jnp.float32).at[0, :FEAT].set(p["b0"])
    b12 = (jnp.zeros((1, LANE), jnp.float32)
           .at[0, 0].set(p["b1"][0])
           .at[0, 1:9].set(p["b2"]))
    bias_blk = jnp.concatenate([b0, b12, jnp.zeros((6, LANE), jnp.float32)], axis=0)
    head_slab = jnp.concatenate([w0f, w0r, w12, bias_blk], axis=0)       # (392, 128)

    return dict(lstm_slab=lstm_slab, head_slab=head_slab)


# ----------------------------------------------------------------------------- reference
def reference_forward(x, p):
    """Pure-JAX replica of LSTMModel.forward (eval mode)."""
    B, T = x.shape
    H = HIDDEN

    def cell(h, c, xt, wih, whh, bih, bhh):
        pre = xt @ wih.T + h @ whh.T + bih + bhh
        i = jax.nn.sigmoid(pre[:, 0:H])
        f = jax.nn.sigmoid(pre[:, H:2 * H])
        g = jnp.tanh(pre[:, 2 * H:3 * H])
        o = jax.nn.sigmoid(pre[:, 3 * H:4 * H])
        c = f * c + i * g
        return o * jnp.tanh(c), c

    h = jnp.zeros((B, H), jnp.float32)
    c = jnp.zeros((B, H), jnp.float32)
    for t in range(T):
        h, c = cell(h, c, x[:, t:t + 1], p["wih_f"], p["whh_f"], p["bih_f"], p["bhh_f"])
    h_rev, _ = cell(jnp.zeros((B, H), jnp.float32), jnp.zeros((B, H), jnp.float32),
                    x[:, T - 1:T], p["wih_r"], p["whh_r"], p["bih_r"], p["bhh_r"])
    feat = jnp.concatenate([h, h_rev, jnp.zeros((B, EMB_D), jnp.float32)], axis=1)
    hid = jnp.maximum(feat @ p["w0"].T + p["b0"], 0.0)
    return (jax.nn.sigmoid(hid @ p["w1"].T + p["b1"]),
            jax.nn.sigmoid(hid @ p["w2"].T + p["b2"]))


# ----------------------------------------------------------------------------- main
if __name__ == "__main__":
    key = jax.random.PRNGKey(0)
    k_x, k_x2, k_p = jax.random.split(key, 3)

    B, T = 8, 8
    x = jax.random.normal(k_x, (B, T), jnp.float32)
    x2 = jax.random.randint(k_x2, (B, 1), 0, EMB_V, jnp.int32)

    raw = init_params(k_p)
    packed = pack_params(raw)

    out1, out2 = lstm_model_forward(x, x2, packed)
    jax.block_until_ready((out1, out2))
    assert out1.shape == (B, 1) and out2.shape == (B, 8)

    ref1, ref2 = reference_forward(x, raw)
    np.testing.assert_allclose(np.asarray(out1), np.asarray(ref1), atol=1e-3, rtol=1e-3)
    np.testing.assert_allclose(np.asarray(out2), np.asarray(ref2), atol=1e-3, rtol=1e-3)

    print("KERNEL_OK")
</pallas_src>

<mosaic_0001>
module attributes {stable_mosaic.version = 11 : i64} {
  func.func @_lstm_model_kernel(%arg0: memref<64x1xf32, #tpu.memory_space<vmem>>, %arg1: memref<136x512xf32, #tpu.memory_space<vmem>>, %arg2: memref<392x128xf32, #tpu.memory_space<any>>, %arg3: memref<8x128xf32, #tpu.memory_space<vmem>>, %arg4: memref<392x128xf32, #tpu.memory_space<vmem>>, %arg5: memref<!tpu.dma_semaphore, #tpu.memory_space<semaphore_mem>>) attributes {dimension_semantics = [], scalar_prefetch = 0 : i64, scratch_operands = 2 : i64, tpu.core_type = #tpu.core_type<tc>} {
    tpu.enqueue_dma source(%arg2 : memref<392x128xf32, #tpu.memory_space<any>>) target(%arg4 : memref<392x128xf32, #tpu.memory_space<vmem>>) target_semaphore(%arg5 : memref<!tpu.dma_semaphore, #tpu.memory_space<semaphore_mem>>)
    %c0 = arith.constant 0 : index
    %c0_0 = arith.constant 0 : index
    %0 = vector.load %arg1[%c0, %c0_0] : memref<136x512xf32, #tpu.memory_space<vmem>>, vector<128x512xf32>
    %c128 = arith.constant 128 : index
    %c0_1 = arith.constant 0 : index
    %1 = vector.load %arg1[%c128, %c0_1] : memref<136x512xf32, #tpu.memory_space<vmem>>, vector<1x512xf32>
    %c129 = arith.constant 129 : index
    %c0_2 = arith.constant 0 : index
    %2 = vector.load %arg1[%c129, %c0_2] : memref<136x512xf32, #tpu.memory_space<vmem>>, vector<1x512xf32>
    %c130 = arith.constant 130 : index
    %c0_3 = arith.constant 0 : index
    %3 = vector.load %arg1[%c130, %c0_3] : memref<136x512xf32, #tpu.memory_space<vmem>>, vector<1x512xf32>
    %c131 = arith.constant 131 : index
    %c0_4 = arith.constant 0 : index
    %4 = vector.load %arg1[%c131, %c0_4] : memref<136x512xf32, #tpu.memory_space<vmem>>, vector<1x512xf32>
    %c0_5 = arith.constant 0 : index
    %c0_6 = arith.constant 0 : index
    %5 = vector.load %arg0[%c0_5, %c0_6] : memref<64x1xf32, #tpu.memory_space<vmem>>, vector<64x1xf32>
    %6 = vector.broadcast %5 : vector<64x1xf32> to vector<64x512xf32>
    %7 = vector.broadcast %1 : vector<1x512xf32> to vector<64x512xf32>
    %8 = arith.mulf %6, %7 : vector<64x512xf32>
    %9 = vector.broadcast %2 : vector<1x512xf32> to vector<64x512xf32>
    %10 = arith.addf %8, %9 : vector<64x512xf32>
    %11 = vector.extract_strided_slice %10 {offsets = [0, 0], sizes = [8, 512], strides = [1, 1]} : vector<64x512xf32> to vector<8x512xf32>
    %cst = arith.constant 0.000000e+00 : f32
    %12 = vector.broadcast %cst : f32 to vector<8x128xf32>
    %13 = vector.extract_strided_slice %11 {offsets = [0, 0], sizes = [8, 128], strides = [1, 1]} : vector<8x512xf32> to vector<8x128xf32>
    %14 = arith.negf %13 : vector<8x128xf32>
    %15 = math.exp %14 : vector<8x128xf32>
    %cst_7 = arith.constant 1.000000e+00 : f32
    %16 = vector.broadcast %cst_7 : f32 to vector<8x128xf32>
    %17 = arith.addf %16, %15 : vector<8x128xf32>
    %18 = arith.divf %16, %17 : vector<8x128xf32>
    %19 = vector.extract_strided_slice %11 {offsets = [0, 128], sizes = [8, 128], strides = [1, 1]} : vector<8x512xf32> to vector<8x128xf32>
    %20 = arith.negf %19 : vector<8x128xf32>
    %21 = math.exp %20 : vector<8x128xf32>
    %cst_8 = arith.constant 1.000000e+00 : f32
    %22 = vector.broadcast %cst_8 : f32 to vector<8x128xf32>
    %23 = arith.addf %22, %21 : vector<8x128xf32>
    %24 = arith.divf %22, %23 : vector<8x128xf32>
    %25 = vector.extract_strided_slice %11 {offsets = [0, 256], sizes = [8, 128], strides = [1, 1]} : vector<8x512xf32> to vector<8x128xf32>
    %26 = math.tanh %25 : vector<8x128xf32>
    %27 = vector.extract_strided_slice %11 {offsets = [0, 384], sizes = [8, 128], strides = [1, 1]} : vector<8x512xf32> to vector<8x128xf32>
    %28 = arith.negf %27 : vector<8x128xf32>
    %29 = math.exp %28 : vector<8x128xf32>
    %cst_9 = arith.constant 1.000000e+00 : f32
    %30 = vector.broadcast %cst_9 : f32 to vector<8x128xf32>
    %31 = arith.addf %30, %29 : vector<8x128xf32>
    %32 = arith.divf %30, %31 : vector<8x128xf32>
    %33 = arith.mulf %24, %12 : vector<8x128xf32>
    %34 = arith.mulf %18, %26 : vector<8x128xf32>
    %35 = arith.addf %33, %34 : vector<8x128xf32>
    %36 = math.tanh %35 : vector<8x128xf32>
    %37 = arith.mulf %32, %36 : vector<8x128xf32>
    %38 = vector.extract_strided_slice %10 {offsets = [8, 0], sizes = [8, 512], strides = [1, 1]} : vector<64x512xf32> to vector<8x512xf32>
    %cst_10 = arith.constant dense<0.000000e+00> : vector<8x512xf32>
    %39 = tpu.matmul %37, %0, %cst_10 {dimension_numbers = #tpu.dot_dimension_numbers<[1], [0], [0], [1], [0, 0, 1, 1], [], []>} : vector<8x128xf32>, vector<128x512xf32>, vector<8x512xf32> -> vector<8x512xf32>
    %40 = arith.addf %38, %39 : vector<8x512xf32>
    %41 = vector.extract_strided_slice %40 {offsets = [0, 0], sizes = [8, 128], strides = [1, 1]} : vector<8x512xf32> to vector<8x128xf32>
    %42 = arith.negf %41 : vector<8x128xf32>
    %43 = math.exp %42 : vector<8x128xf32>
    %cst_11 = arith.constant 1.000000e+00 : f32
    %44 = vector.broadcast %cst_11 : f32 to vector<8x128xf32>
    %45 = arith.addf %44, %43 : vector<8x128xf32>
    %46 = arith.divf %44, %45 : vector<8x128xf32>
    %47 = vector.extract_strided_slice %40 {offsets = [0, 128], sizes = [8, 128], strides = [1, 1]} : vector<8x512xf32> to vector<8x128xf32>
    %48 = arith.negf %47 : vector<8x128xf32>
    %49 = math.exp %48 : vector<8x128xf32>
    %cst_12 = arith.constant 1.000000e+00 : f32
    %50 = vector.broadcast %cst_12 : f32 to vector<8x128xf32>
    %51 = arith.addf %50, %49 : vector<8x128xf32>
    %52 = arith.divf %50, %51 : vector<8x128xf32>
    %53 = vector.extract_strided_slice %40 {offsets = [0, 256], sizes = [8, 128], strides = [1, 1]} : vector<8x512xf32> to vector<8x128xf32>
    %54 = math.tanh %53 : vector<8x128xf32>
    %55 = vector.extract_strided_slice %40 {offsets = [0, 384], sizes = [8, 128], strides = [1, 1]} : vector<8x512xf32> to vector<8x128xf32>
    %56 = arith.negf %55 : vector<8x128xf32>
    %57 = math.exp %56 : vector<8x128xf32>
    %cst_13 = arith.constant 1.000000e+00 : f32
    %58 = vector.broadcast %cst_13 : f32 to vector<8x128xf32>
    %59 = arith.addf %58, %57 : vector<8x128xf32>
    %60 = arith.divf %58, %59 : vector<8x128xf32>
    %61 = arith.mulf %52, %35 : vector<8x128xf32>
    %62 = arith.mulf %46, %54 : vector<8x128xf32>
    %63 = arith.addf %61, %62 : vector<8x128xf32>
    %64 = math.tanh %63 : vector<8x128xf32>
    %65 = arith.mulf %60, %64 : vector<8x128xf32>
    %66 = vector.extract_strided_slice %10 {offsets = [16, 0], sizes = [8, 512], strides = [1, 1]} : vector<64x512xf32> to vector<8x512xf32>
    %cst_14 = arith.constant dense<0.000000e+00> : vector<8x512xf32>
    %67 = tpu.matmul %65, %0, %cst_14 {dimension_numbers = #tpu.dot_dimension_numbers<[1], [0], [0], [1], [0, 0, 1, 1], [], []>} : vector<8x128xf32>, vector<128x512xf32>, vector<8x512xf32> -> vector<8x512xf32>
    %68 = arith.addf %66, %67 : vector<8x512xf32>
    %69 = vector.extract_strided_slice %68 {offsets = [0, 0], sizes = [8, 128], strides = [1, 1]} : vector<8x512xf32> to vector<8x128xf32>
    %70 = arith.negf %69 : vector<8x128xf32>
    %71 = math.exp %70 : vector<8x128xf32>
    %cst_15 = arith.constant 1.000000e+00 : f32
    %72 = vector.broadcast %cst_15 : f32 to vector<8x128xf32>
    %73 = arith.addf %72, %71 : vector<8x128xf32>
    %74 = arith.divf %72, %73 : vector<8x128xf32>
    %75 = vector.extract_strided_slice %68 {offsets = [0, 128], sizes = [8, 128], strides = [1, 1]} : vector<8x512xf32> to vector<8x128xf32>
    %76 = arith.negf %75 : vector<8x128xf32>
    %77 = math.exp %76 : vector<8x128xf32>
    %cst_16 = arith.constant 1.000000e+00 : f32
    %78 = vector.broadcast %cst_16 : f32 to vector<8x128xf32>
    %79 = arith.addf %78, %77 : vector<8x128xf32>
    %80 = arith.divf %78, %79 : vector<8x128xf32>
    %81 = vector.extract_strided_slice %68 {offsets = [0, 256], sizes = [8, 128], strides = [1, 1]} : vector<8x512xf32> to vector<8x128xf32>
    %82 = math.tanh %81 : vector<8x128xf32>
    %83 = vector.extract_strided_slice %68 {offsets = [0, 384], sizes = [8, 128], strides = [1, 1]} : vector<8x512xf32> to vector<8x128xf32>
    %84 = arith.negf %83 : vector<8x128xf32>
    %85 = math.exp %84 : vector<8x128xf32>
    %cst_17 = arith.constant 1.000000e+00 : f32
    %86 = vector.broadcast %cst_17 : f32 to vector<8x128xf32>
    %87 = arith.addf %86, %85 : vector<8x128xf32>
    %88 = arith.divf %86, %87 : vector<8x128xf32>
    %89 = arith.mulf %80, %63 : vector<8x128xf32>
    %90 = arith.mulf %74, %82 : vector<8x128xf32>
    %91 = arith.addf %89, %90 : vector<8x128xf32>
    %92 = math.tanh %91 : vector<8x128xf32>
    %93 = arith.mulf %88, %92 : vector<8x128xf32>
    %94 = vector.extract_strided_slice %10 {offsets = [24, 0], sizes = [8, 512], strides = [1, 1]} : vector<64x512xf32> to vector<8x512xf32>
    %cst_18 = arith.constant dense<0.000000e+00> : vector<8x512xf32>
    %95 = tpu.matmul %93, %0, %cst_18 {dimension_numbers = #tpu.dot_dimension_numbers<[1], [0], [0], [1], [0, 0, 1, 1], [], []>} : vector<8x128xf32>, vector<128x512xf32>, vector<8x512xf32> -> vector<8x512xf32>
    %96 = arith.addf %94, %95 : vector<8x512xf32>
    %97 = vector.extract_strided_slice %96 {offsets = [0, 0], sizes = [8, 128], strides = [1, 1]} : vector<8x512xf32> to vector<8x128xf32>
    %98 = arith.negf %97 : vector<8x128xf32>
    %99 = math.exp %98 : vector<8x128xf32>
    %cst_19 = arith.constant 1.000000e+00 : f32
    %100 = vector.broadcast %cst_19 : f32 to vector<8x128xf32>
    %101 = arith.addf %100, %99 : vector<8x128xf32>
    %102 = arith.divf %100, %101 : vector<8x128xf32>
    %103 = vector.extract_strided_slice %96 {offsets = [0, 128], sizes = [8, 128], strides = [1, 1]} : vector<8x512xf32> to vector<8x128xf32>
    %104 = arith.negf %103 : vector<8x128xf32>
    %105 = math.exp %104 : vector<8x128xf32>
    %cst_20 = arith.constant 1.000000e+00 : f32
    %106 = vector.broadcast %cst_20 : f32 to vector<8x128xf32>
    %107 = arith.addf %106, %105 : vector<8x128xf32>
    %108 = arith.divf %106, %107 : vector<8x128xf32>
    %109 = vector.extract_strided_slice %96 {offsets = [0, 256], sizes = [8, 128], strides = [1, 1]} : vector<8x512xf32> to vector<8x128xf32>
    %110 = math.tanh %109 : vector<8x128xf32>
    %111 = vector.extract_strided_slice %96 {offsets = [0, 384], sizes = [8, 128], strides = [1, 1]} : vector<8x512xf32> to vector<8x128xf32>
    %112 = arith.negf %111 : vector<8x128xf32>
    %113 = math.exp %112 : vector<8x128xf32>
    %cst_21 = arith.constant 1.000000e+00 : f32
    %114 = vector.broadcast %cst_21 : f32 to vector<8x128xf32>
    %115 = arith.addf %114, %113 : vector<8x128xf32>
    %116 = arith.divf %114, %115 : vector<8x128xf32>
    %117 = arith.mulf %108, %91 : vector<8x128xf32>
    %118 = arith.mulf %102, %110 : vector<8x128xf32>
    %119 = arith.addf %117, %118 : vector<8x128xf32>
    %120 = math.tanh %119 : vector<8x128xf32>
    %121 = arith.mulf %116, %120 : vector<8x128xf32>
    %122 = vector.extract_strided_slice %10 {offsets = [32, 0], sizes = [8, 512], strides = [1, 1]} : vector<64x512xf32> to vector<8x512xf32>
    %cst_22 = arith.constant dense<0.000000e+00> : vector<8x512xf32>
    %123 = tpu.matmul %121, %0, %cst_22 {dimension_numbers = #tpu.dot_dimension_numbers<[1], [0], [0], [1], [0, 0, 1, 1], [], []>} : vector<8x128xf32>, vector<128x512xf32>, vector<8x512xf32> -> vector<8x512xf32>
    %124 = arith.addf %122, %123 : vector<8x512xf32>
    %125 = vector.extract_strided_slice %124 {offsets = [0, 0], sizes = [8, 128], strides = [1, 1]} : vector<8x512xf32> to vector<8x128xf32>
    %126 = arith.negf %125 : vector<8x128xf32>
    %127 = math.exp %126 : vector<8x128xf32>
    %cst_23 = arith.constant 1.000000e+00 : f32
    %128 = vector.broadcast %cst_23 : f32 to vector<8x128xf32>
    %129 = arith.addf %128, %127 : vector<8x128xf32>
    %130 = arith.divf %128, %129 : vector<8x128xf32>
    %131 = vector.extract_strided_slice %124 {offsets = [0, 128], sizes = [8, 128], strides = [1, 1]} : vector<8x512xf32> to vector<8x128xf32>
    %132 = arith.negf %131 : vector<8x128xf32>
    %133 = math.exp %132 : vector<8x128xf32>
    %cst_24 = arith.constant 1.000000e+00 : f32
    %134 = vector.broadcast %cst_24 : f32 to vector<8x128xf32>
    %135 = arith.addf %134, %133 : vector<8x128xf32>
    %136 = arith.divf %134, %135 : vector<8x128xf32>
    %137 = vector.extract_strided_slice %124 {offsets = [0, 256], sizes = [8, 128], strides = [1, 1]} : vector<8x512xf32> to vector<8x128xf32>
    %138 = math.tanh %137 : vector<8x128xf32>
    %139 = vector.extract_strided_slice %124 {offsets = [0, 384], sizes = [8, 128], strides = [1, 1]} : vector<8x512xf32> to vector<8x128xf32>
    %140 = arith.negf %139 : vector<8x128xf32>
    %141 = math.exp %140 : vector<8x128xf32>
    %cst_25 = arith.constant 1.000000e+00 : f32
    %142 = vector.broadcast %cst_25 : f32 to vector<8x128xf32>
    %143 = arith.addf %142, %141 : vector<8x128xf32>
    %144 = arith.divf %142, %143 : vector<8x128xf32>
    %145 = arith.mulf %136, %119 : vector<8x128xf32>
    %146 = arith.mulf %130, %138 : vector<8x128xf32>
    %147 = arith.addf %145, %146 : vector<8x128xf32>
    %148 = math.tanh %147 : vector<8x128xf32>
    %149 = arith.mulf %144, %148 : vector<8x128xf32>
    %150 = vector.extract_strided_slice %10 {offsets = [40, 0], sizes = [8, 512], strides = [1, 1]} : vector<64x512xf32> to vector<8x512xf32>
    %cst_26 = arith.constant dense<0.000000e+00> : vector<8x512xf32>
    %151 = tpu.matmul %149, %0, %cst_26 {dimension_numbers = #tpu.dot_dimension_numbers<[1], [0], [0], [1], [0, 0, 1, 1], [], []>} : vector<8x128xf32>, vector<128x512xf32>, vector<8x512xf32> -> vector<8x512xf32>
    %152 = arith.addf %150, %151 : vector<8x512xf32>
    %153 = vector.extract_strided_slice %152 {offsets = [0, 0], sizes = [8, 128], strides = [1, 1]} : vector<8x512xf32> to vector<8x128xf32>
    %154 = arith.negf %153 : vector<8x128xf32>
    %155 = math.exp %154 : vector<8x128xf32>
    %cst_27 = arith.constant 1.000000e+00 : f32
    %156 = vector.broadcast %cst_27 : f32 to vector<8x128xf32>
    %157 = arith.addf %156, %155 : vector<8x128xf32>
    %158 = arith.divf %156, %157 : vector<8x128xf32>
    %159 = vector.extract_strided_slice %152 {offsets = [0, 128], sizes = [8, 128], strides = [1, 1]} : vector<8x512xf32> to vector<8x128xf32>
    %160 = arith.negf %159 : vector<8x128xf32>
    %161 = math.exp %160 : vector<8x128xf32>
    %cst_28 = arith.constant 1.000000e+00 : f32
    %162 = vector.broadcast %cst_28 : f32 to vector<8x128xf32>
    %163 = arith.addf %162, %161 : vector<8x128xf32>
    %164 = arith.divf %162, %163 : vector<8x128xf32>
    %165 = vector.extract_strided_slice %152 {offsets = [0, 256], sizes = [8, 128], strides = [1, 1]} : vector<8x512xf32> to vector<8x128xf32>
    %166 = math.tanh %165 : vector<8x128xf32>
    %167 = vector.extract_strided_slice %152 {offsets = [0, 384], sizes = [8, 128], strides = [1, 1]} : vector<8x512xf32> to vector<8x128xf32>
    %168 = arith.negf %167 : vector<8x128xf32>
    %169 = math.exp %168 : vector<8x128xf32>
    %cst_29 = arith.constant 1.000000e+00 : f32
    %170 = vector.broadcast %cst_29 : f32 to vector<8x128xf32>
    %171 = arith.addf %170, %169 : vector<8x128xf32>
    %172 = arith.divf %170, %171 : vector<8x128xf32>
    %173 = arith.mulf %164, %147 : vector<8x128xf32>
    %174 = arith.mulf %158, %166 : vector<8x128xf32>
    %175 = arith.addf %173, %174 : vector<8x128xf32>
    %176 = math.tanh %175 : vector<8x128xf32>
    %177 = arith.mulf %172, %176 : vector<8x128xf32>
    %178 = vector.extract_strided_slice %10 {offsets = [48, 0], sizes = [8, 512], strides = [1, 1]} : vector<64x512xf32> to vector<8x512xf32>
    %cst_30 = arith.constant dense<0.000000e+00> : vector<8x512xf32>
    %179 = tpu.matmul %177, %0, %cst_30 {dimension_numbers = #tpu.dot_dimension_numbers<[1], [0], [0], [1], [0, 0, 1, 1], [], []>} : vector<8x128xf32>, vector<128x512xf32>, vector<8x512xf32> -> vector<8x512xf32>
    %180 = arith.addf %178, %179 : vector<8x512xf32>
    %181 = vector.extract_strided_slice %180 {offsets = [0, 0], sizes = [8, 128], strides = [1, 1]} : vector<8x512xf32> to vector<8x128xf32>
    %182 = arith.negf %181 : vector<8x128xf32>
    %183 = math.exp %182 : vector<8x128xf32>
    %cst_31 = arith.constant 1.000000e+00 : f32
    %184 = vector.broadcast %cst_31 : f32 to vector<8x128xf32>
    %185 = arith.addf %184, %183 : vector<8x128xf32>
    %186 = arith.divf %184, %185 : vector<8x128xf32>
    %187 = vector.extract_strided_slice %180 {offsets = [0, 128], sizes = [8, 128], strides = [1, 1]} : vector<8x512xf32> to vector<8x128xf32>
    %188 = arith.negf %187 : vector<8x128xf32>
    %189 = math.exp %188 : vector<8x128xf32>
    %cst_32 = arith.constant 1.000000e+00 : f32
    %190 = vector.broadcast %cst_32 : f32 to vector<8x128xf32>
    %191 = arith.addf %190, %189 : vector<8x128xf32>
    %192 = arith.divf %190, %191 : vector<8x128xf32>
    %193 = vector.extract_strided_slice %180 {offsets = [0, 256], sizes = [8, 128], strides = [1, 1]} : vector<8x512xf32> to vector<8x128xf32>
    %194 = math.tanh %193 : vector<8x128xf32>
    %195 = vector.extract_strided_slice %180 {offsets = [0, 384], sizes = [8, 128], strides = [1, 1]} : vector<8x512xf32> to vector<8x128xf32>
    %196 = arith.negf %195 : vector<8x128xf32>
    %197 = math.exp %196 : vector<8x128xf32>
    %cst_33 = arith.constant 1.000000e+00 : f32
    %198 = vector.broadcast %cst_33 : f32 to vector<8x128xf32>
    %199 = arith.addf %198, %197 : vector<8x128xf32>
    %200 = arith.divf %198, %199 : vector<8x128xf32>
    %201 = arith.mulf %192, %175 : vector<8x128xf32>
    %202 = arith.mulf %186, %194 : vector<8x128xf32>
    %203 = arith.addf %201, %202 : vector<8x128xf32>
    %204 = math.tanh %203 : vector<8x128xf32>
    %205 = arith.mulf %200, %204 : vector<8x128xf32>
    %206 = vector.extract_strided_slice %10 {offsets = [56, 0], sizes = [8, 512], strides = [1, 1]} : vector<64x512xf32> to vector<8x512xf32>
    %cst_34 = arith.constant dense<0.000000e+00> : vector<8x512xf32>
    %207 = tpu.matmul %205, %0, %cst_34 {dimension_numbers = #tpu.dot_dimension_numbers<[1], [0], [0], [1], [0, 0, 1, 1], [], []>} : vector<8x128xf32>, vector<128x512xf32>, vector<8x512xf32> -> vector<8x512xf32>
    %208 = arith.addf %206, %207 : vector<8x512xf32>
    %209 = vector.extract_strided_slice %208 {offsets = [0, 0], sizes = [8, 128], strides = [1, 1]} : vector<8x512xf32> to vector<8x128xf32>
    %210 = arith.negf %209 : vector<8x128xf32>
    %211 = math.exp %210 : vector<8x128xf32>
    %cst_35 = arith.constant 1.000000e+00 : f32
    %212 = vector.broadcast %cst_35 : f32 to vector<8x128xf32>
    %213 = arith.addf %212, %211 : vector<8x128xf32>
    %214 = arith.divf %212, %213 : vector<8x128xf32>
    %215 = vector.extract_strided_slice %208 {offsets = [0, 128], sizes = [8, 128], strides = [1, 1]} : vector<8x512xf32> to vector<8x128xf32>
    %216 = arith.negf %215 : vector<8x128xf32>
    %217 = math.exp %216 : vector<8x128xf32>
    %cst_36 = arith.constant 1.000000e+00 : f32
    %218 = vector.broadcast %cst_36 : f32 to vector<8x128xf32>
    %219 = arith.addf %218, %217 : vector<8x128xf32>
    %220 = arith.divf %218, %219 : vector<8x128xf32>
    %221 = vector.extract_strided_slice %208 {offsets = [0, 256], sizes = [8, 128], strides = [1, 1]} : vector<8x512xf32> to vector<8x128xf32>
    %222 = math.tanh %221 : vector<8x128xf32>
    %223 = vector.extract_strided_slice %208 {offsets = [0, 384], sizes = [8, 128], strides = [1, 1]} : vector<8x512xf32> to vector<8x128xf32>
    %224 = arith.negf %223 : vector<8x128xf32>
    %225 = math.exp %224 : vector<8x128xf32>
    %cst_37 = arith.constant 1.000000e+00 : f32
    %226 = vector.broadcast %cst_37 : f32 to vector<8x128xf32>
    %227 = arith.addf %226, %225 : vector<8x128xf32>
    %228 = arith.divf %226, %227 : vector<8x128xf32>
    %229 = arith.mulf %220, %203 : vector<8x128xf32>
    %230 = arith.mulf %214, %222 : vector<8x128xf32>
    %231 = arith.addf %229, %230 : vector<8x128xf32>
    %232 = math.tanh %231 : vector<8x128xf32>
    %233 = arith.mulf %228, %232 : vector<8x128xf32>
    %234 = vector.extract_strided_slice %5 {offsets = [56, 0], sizes = [8, 1], strides = [1, 1]} : vector<64x1xf32> to vector<8x1xf32>
    %235 = vector.broadcast %234 : vector<8x1xf32> to vector<8x512xf32>
    %236 = vector.broadcast %3 : vector<1x512xf32> to vector<8x512xf32>
    %237 = arith.mulf %235, %236 : vector<8x512xf32>
    %238 = vector.broadcast %4 : vector<1x512xf32> to vector<8x512xf32>
    %239 = arith.addf %237, %238 : vector<8x512xf32>
    %cst_38 = arith.constant 0.000000e+00 : f32
    %240 = vector.broadcast %cst_38 : f32 to vector<8x128xf32>
    %241 = vector.extract_strided_slice %239 {offsets = [0, 0], sizes = [8, 128], strides = [1, 1]} : vector<8x512xf32> to vector<8x128xf32>
    %242 = arith.negf %241 : vector<8x128xf32>
    %243 = math.exp %242 : vector<8x128xf32>
    %cst_39 = arith.constant 1.000000e+00 : f32
    %244 = vector.broadcast %cst_39 : f32 to vector<8x128xf32>
    %245 = arith.addf %244, %243 : vector<8x128xf32>
    %246 = arith.divf %244, %245 : vector<8x128xf32>
    %247 = vector.extract_strided_slice %239 {offsets = [0, 128], sizes = [8, 128], strides = [1, 1]} : vector<8x512xf32> to vector<8x128xf32>
    %248 = arith.negf %247 : vector<8x128xf32>
    %249 = math.exp %248 : vector<8x128xf32>
    %cst_40 = arith.constant 1.000000e+00 : f32
    %250 = vector.broadcast %cst_40 : f32 to vector<8x128xf32>
    %251 = arith.addf %250, %249 : vector<8x128xf32>
    %252 = arith.divf %250, %251 : vector<8x128xf32>
    %253 = vector.extract_strided_slice %239 {offsets = [0, 256], sizes = [8, 128], strides = [1, 1]} : vector<8x512xf32> to vector<8x128xf32>
    %254 = math.tanh %253 : vector<8x128xf32>
    %255 = vector.extract_strided_slice %239 {offsets = [0, 384], sizes = [8, 128], strides = [1, 1]} : vector<8x512xf32> to vector<8x128xf32>
    %256 = arith.negf %255 : vector<8x128xf32>
    %257 = math.exp %256 : vector<8x128xf32>
    %cst_41 = arith.constant 1.000000e+00 : f32
    %258 = vector.broadcast %cst_41 : f32 to vector<8x128xf32>
    %259 = arith.addf %258, %257 : vector<8x128xf32>
    %260 = arith.divf %258, %259 : vector<8x128xf32>
    %261 = arith.mulf %252, %240 : vector<8x128xf32>
    %262 = arith.mulf %246, %254 : vector<8x128xf32>
    %263 = arith.addf %261, %262 : vector<8x128xf32>
    %264 = math.tanh %263 : vector<8x128xf32>
    %265 = arith.mulf %260, %264 : vector<8x128xf32>
    tpu.wait_dma2 semaphore(%arg5 : memref<!tpu.dma_semaphore, #tpu.memory_space<semaphore_mem>>) src(%arg2 : memref<392x128xf32, #tpu.memory_space<any>>) dst(%arg4 : memref<392x128xf32, #tpu.memory_space<vmem>>)
    %c0_42 = arith.constant 0 : index
    %c0_43 = arith.constant 0 : index
    %266 = vector.load %arg4[%c0_42, %c0_43] : memref<392x128xf32, #tpu.memory_space<vmem>>, vector<256x128xf32>
    %c256 = arith.constant 256 : index
    %c0_44 = arith.constant 0 : index
    %267 = vector.load %arg4[%c256, %c0_44] : memref<392x128xf32, #tpu.memory_space<vmem>>, vector<128x128xf32>
    %c384 = arith.constant 384 : index
    %c0_45 = arith.constant 0 : index
    %268 = vector.load %arg4[%c384, %c0_45] : memref<392x128xf32, #tpu.memory_space<vmem>>, vector<1x128xf32>
    %c385 = arith.constant 385 : index
    %c0_46 = arith.constant 0 : index
    %269 = vector.load %arg4[%c385, %c0_46] : memref<392x128xf32, #tpu.memory_space<vmem>>, vector<1x128xf32>
    %270 = tpu.concatenate %233, %265 in 1 : vector<8x128xf32>, vector<8x128xf32> -> vector<8x256xf32>
    %cst_47 = arith.constant dense<0.000000e+00> : vector<8x128xf32>
    %271 = tpu.matmul %270, %266, %cst_47 {dimension_numbers = #tpu.dot_dimension_numbers<[1], [0], [0], [1], [0, 0, 1, 1], [], []>} : vector<8x256xf32>, vector<256x128xf32>, vector<8x128xf32> -> vector<8x128xf32>
    %272 = vector.broadcast %268 : vector<1x128xf32> to vector<8x128xf32>
    %273 = arith.addf %271, %272 : vector<8x128xf32>
    %cst_48 = arith.constant 0.000000e+00 : f32
    %274 = vector.broadcast %cst_48 : f32 to vector<8x128xf32>
    %275 = arith.maximumf %273, %274 : vector<8x128xf32>
    %cst_49 = arith.constant dense<0.000000e+00> : vector<8x128xf32>
    %276 = tpu.matmul %275, %267, %cst_49 {dimension_numbers = #tpu.dot_dimension_numbers<[1], [0], [0], [1], [0, 0, 1, 1], [], []>} : vector<8x128xf32>, vector<128x128xf32>, vector<8x128xf32> -> vector<8x128xf32>
    %277 = vector.broadcast %269 : vector<1x128xf32> to vector<8x128xf32>
    %278 = arith.addf %276, %277 : vector<8x128xf32>
    %279 = arith.negf %278 : vector<8x128xf32>
    %280 = math.exp %279 : vector<8x128xf32>
    %cst_50 = arith.constant 1.000000e+00 : f32
    %281 = vector.broadcast %cst_50 : f32 to vector<8x128xf32>
    %282 = arith.addf %281, %280 : vector<8x128xf32>
    %283 = arith.divf %281, %282 : vector<8x128xf32>
    %c0_51 = arith.constant 0 : index
    %c0_52 = arith.constant 0 : index
    %284 = vector.load %arg3[%c0_51, %c0_52] : memref<8x128xf32, #tpu.memory_space<vmem>>, vector<8x128xf32>
    tpu.vector_store %arg3[%c0_51, %c0_52], %283 {strides = array<i32>} : memref<8x128xf32, #tpu.memory_space<vmem>>, vector<8x128xf32>,
    return
  }
}

</mosaic_0001>

<llo_original>
// kernel: tpu_custom_call.1
$region0: #{tpu_custom_call.1}
  #allocation0 [shape = 'u32[]', space=smem, size = 0x4, offset = 0x4, fixed_abs, tag = 'smem constant byte address 0x4 - core index']
  #allocation1 [shape = 'u32[72,128]{1,0:T(1,128)}', space=vmem, size = 0x9000, scoped, tag = 'internal scratch']
  #allocation2 [shape = 'f32[392,128]{1,0:T(8,128)}', space=vmem, size = 0x31000, scoped, tag = 'scratch operand']
  #allocation3 [shape = 's32[1]{0}', space=sflag, size = 0x4, scoped, tag = 'scratch operand']
  #allocation8 [shape = 's32[]', space=sflag, size = 0x4, offset = 0, fixed_abs, tag = 'sflag constant byte address 0x0 - dummy sync flag']
  #allocation9 [shape = 's32[]', space=sflag, size = 0x4, offset = 0, fixed_abs, tag = 'sflag constant byte address 0x0 - dummy sync flag']
  #allocation10 [shape = 'u32[]', space=smem, size = 0x4, offset = 0x44, fixed_abs, tag = 'smem constant byte address 0x44 - assertion arg 0']
  #allocation11 [shape = 'u32[]', space=smem, size = 0x4, offset = 0x48, fixed_abs, tag = 'smem constant byte address 0x48 - assertion arg 1']
  %s0 = inlined_call_operand.vmem [shape: f32[64,1], index: 0, kind: input, shape index: {}]
  %s1 = inlined_call_operand.hbm [shape: f32[136,512], index: 1, kind: input, shape index: {}]
  %s2 = inlined_call_operand.hbm [shape: f32[392,128], index: 2, kind: input, shape index: {}]
  %s3 = inlined_call_operand.hbm [shape: f32[8,128], index: 3, kind: output, shape index: {}]
  %s4 = sld [smem:[#allocation0]]
  $region26: #{tpu_custom_call.1} parent=0
    _
  %s6 = ssub.s32 1, %s4
  %s7 = scalar_select 0, %s6, %s4
  $region1: #{tpu_custom_call.1} parent=0
    #allocation4 [shape = 'u8[278528]{0}', space=vmem, size = 0x44000, scoped, tag = 'input window, operand 1, single buffered']
    #allocation5 [shape = 's32[1]{0}', space=sflag, size = 0x4, scoped, tag = 'scoped memory for tpu_custom_call.1']
    #allocation6 [shape = 's32[1]{0}', space=sflag, size = 0x4, scoped, tag = 'scoped memory for tpu_custom_call.1']
    #allocation7 [shape = 'u8[4096]{0}', space=vmem, size = 0x1000, scoped, tag = 'output window, operand 0, single buffered']
    %8 = vsyncpa [#allocation5], 0
    %9 = vsyncpa [#allocation6], 0
    // Predicated region
    $region2: #{tpu_custom_call.1} parent=1 // pred_check
      _
    $region3: #{tpu_custom_call.1} parent=1 // pred_check_branch
      %11 = sbr.rel (0) target = $region5
    $region4: #{tpu_custom_call.1} parent=1 // pred_region
      _
    $region5: #{tpu_custom_call.1} parent=1 // pred_fallthru
      _
    // Predicated region
    $region6: #{tpu_custom_call.1} parent=1 // pred_check
      _
    $region7: #{tpu_custom_call.1} parent=1 // pred_check_branch
      %13 = sbr.rel (0) target = $region9
    $region8: #{tpu_custom_call.1} parent=1 // pred_region
      %15 = vsyncadd [#allocation5], 0
      %s16 = sshll.u32 %s1, 4
      %s17 = int_to_ptr.hbm [resolvable:$true] %s16
      %s18 = sshll.u32 [#allocation4], 4
      %s19 = int_to_ptr.vmem [resolvable:$true] %s18
      %24 = dma.hbm_to_vmem [thread:$0]  %s17, 8704, %s19, [#allocation5], 512, 512, 32
    $region9: #{tpu_custom_call.1} parent=1 // pred_fallthru
      _
    // Predicated region
    $region10: #{tpu_custom_call.1} parent=1 // pred_check
      _
    $region11: #{tpu_custom_call.1} parent=1 // pred_check_branch
      %26 = sbr.rel (0) target = $region13
    $region12: #{tpu_custom_call.1} parent=1 // pred_region
      %28 = dma.done [#allocation5], 8704
    $region13: #{tpu_custom_call.1} parent=1 // pred_fallthru
      _
    // Predicated region
    $region14: #{tpu_custom_call.1} parent=1 // pred_check
      _
    $region15: #{tpu_custom_call.1} parent=1 // pred_check_branch
      %30 = sbr.rel target = $region17
    $region16: #{tpu_custom_call.1} parent=1 // pred_region
      %31 = sst [smem:[#allocation10]] [#allocation9]
      %32 = sst [smem:[#allocation11]] [#allocation8]
    $region17: #{tpu_custom_call.1} parent=1 // pred_fallthru
      _
    %34 = shalt.err (0)
    %s36 = sshll.u32 %s2, 4
    %s37 = int_to_ptr.hbm [resolvable:$true] %s36
    %s38 = sshll.u32 [#allocation2], 4
    %s39 = int_to_ptr.vmem [resolvable:$true] %s38
    %41 = dma.hbm_to_vmem [thread:$0]  %s37, 6272, %s39, [#allocation3]
    %v42 = vld [vmem:[#allocation4] sm:$0xff]
    %v43 = vld [vmem:[#allocation4 + $0x8] sm:$0xff]
    %v44 = vld [vmem:[#allocation4 + $0x10] sm:$0xff]
    %v45 = vld [vmem:[#allocation4 + $0x18] sm:$0xff]
    %v46 = vld [vmem:[#allocation4 + $0x20] sm:$0xff]
    %v47 = vld [vmem:[#allocation4 + $0x28] sm:$0xff]
    %v48 = vld [vmem:[#allocation4 + $0x30] sm:$0xff]
    %v49 = vld [vmem:[#allocation4 + $0x38] sm:$0xff]
    %v50 = vld [vmem:[#allocation4 + $0x40] sm:$0xff]
    %v51 = vld [vmem:[#allocation4 + $0x48] sm:$0xff]
    %v52 = vld [vmem:[#allocation4 + $0x50] sm:$0xff]
    %v53 = vld [vmem:[#allocation4 + $0x58] sm:$0xff]
    %v54 = vld [vmem:[#allocation4 + $0x60] sm:$0xff]
    %v55 = vld [vmem:[#allocation4 + $0x68] sm:$0xff]
    %v56 = vld [vmem:[#allocation4 + $0x70] sm:$0xff]
    %v57 = vld [vmem:[#allocation4 + $0x78] sm:$0xff]
    %v58 = vld [vmem:[#allocation4 + $0x80] sm:$0xff]
    %v59 = vld [vmem:[#allocation4 + $0x88] sm:$0xff]
    %v60 = vld [vmem:[#allocation4 + $0x90] sm:$0xff]
    %v61 = vld [vmem:[#allocation4 + $0x98] sm:$0xff]
    %v62 = vld [vmem:[#allocation4 + $0xa0] sm:$0xff]
    %v63 = vld [vmem:[#allocation4 + $0xa8] sm:$0xff]
    %v64 = vld [vmem:[#allocation4 + $0xb0] sm:$0xff]
    %v65 = vld [vmem:[#allocation4 + $0xb8] sm:$0xff]
    %v66 = vld [vmem:[#allocation4 + $0xc0] sm:$0xff]
    %v67 = vld [vmem:[#allocation4 + $0xc8] sm:$0xff]
    %v68 = vld [vmem:[#allocation4 + $0xd0] sm:$0xff]
    %v69 = vld [vmem:[#allocation4 + $0xd8] sm:$0xff]
    %v70 = vld [vmem:[#allocation4 + $0xe0] sm:$0xff]
    %v71 = vld [vmem:[#allocation4 + $0xe8] sm:$0xff]
    %v72 = vld [vmem:[#allocation4 + $0xf0] sm:$0xff]
    %v73 = vld [vmem:[#allocation4 + $0xf8] sm:$0xff]
    %v74 = vld [vmem:[#allocation4 + $0x100] sm:$0xff]
    %v75 = vld [vmem:[#allocation4 + $0x108] sm:$0xff]
    %v76 = vld [vmem:[#allocation4 + $0x110] sm:$0xff]
    %v77 = vld [vmem:[#allocation4 + $0x118] sm:$0xff]
    %v78 = vld [vmem:[#allocation4 + $0x120] sm:$0xff]
    %v79 = vld [vmem:[#allocation4 + $0x128] sm:$0xff]
    %v80 = vld [vmem:[#allocation4 + $0x130] sm:$0xff]
    %v81 = vld [vmem:[#allocation4 + $0x138] sm:$0xff]
    %v82 = vld [vmem:[#allocation4 + $0x140] sm:$0xff]
    %v83 = vld [vmem:[#allocation4 + $0x148] sm:$0xff]
    %v84 = vld [vmem:[#allocation4 + $0x150] sm:$0xff]
    %v85 = vld [vmem:[#allocation4 + $0x158] sm:$0xff]
    %v86 = vld [vmem:[#allocation4 + $0x160] sm:$0xff]
    %v87 = vld [vmem:[#allocation4 + $0x168] sm:$0xff]
    %v88 = vld [vmem:[#allocation4 + $0x170] sm:$0xff]
    %v89 = vld [vmem:[#allocation4 + $0x178] sm:$0xff]
    %v90 = vld [vmem:[#allocation4 + $0x180] sm:$0xff]
    %v91 = vld [vmem:[#allocation4 + $0x188] sm:$0xff]
    %v92 = vld [vmem:[#allocation4 + $0x190] sm:$0xff]
    %v93 = vld [vmem:[#allocation4 + $0x198] sm:$0xff]
    %v94 = vld [vmem:[#allocation4 + $0x1a0] sm:$0xff]
    %v95 = vld [vmem:[#allocation4 + $0x1a8] sm:$0xff]
    %v96 = vld [vmem:[#allocation4 + $0x1b0] sm:$0xff]
    %v97 = vld [vmem:[#allocation4 + $0x1b8] sm:$0xff]
    %v98 = vld [vmem:[#allocation4 + $0x1c0] sm:$0xff]
    %v99 = vld [vmem:[#allocation4 + $0x1c8] sm:$0xff]
    %v100 = vld [vmem:[#allocation4 + $0x1d0] sm:$0xff]
    %v101 = vld [vmem:[#allocation4 + $0x1d8] sm:$0xff]
    %v102 = vld [vmem:[#allocation4 + $0x1e0] sm:$0xff]
    %v103 = vld [vmem:[#allocation4 + $0x1e8] sm:$0xff]
    %v104 = vld [vmem:[#allocation4 + $0x1f0] sm:$0xff]
    %v105 = vld [vmem:[#allocation4 + $0x1f8] sm:$0xff]
    %s106 = scalar_lea.vmem [#allocation4], 512
    %v107 = vld [vmem:[%s106] ss:$8 sm:$0xf]
    %s108 = scalar_lea.vmem [#allocation4], 513
    %v109 = vld [vmem:[%s108] ss:$8 sm:$0xf]
    %s110 = scalar_lea.vmem [#allocation4], 514
    %v111 = vld [vmem:[%s110] ss:$8 sm:$0xf]
    %s112 = scalar_lea.vmem [#allocation4], 515
    %v113 = vld [vmem:[%s112] ss:$8 sm:$0xf]
    %v114 = vld [vmem:[%s0] sm:$0xff]
    %v115 = vld [vmem:[%s0 + $0x8] sm:$0xff]
    %v116 = vld [vmem:[%s0 + $0x10] sm:$0xff]
    %v117 = vld [vmem:[%s0 + $0x18] sm:$0xff]
    %v118 = vld [vmem:[%s0 + $0x20] sm:$0xff]
    %v119 = vld [vmem:[%s0 + $0x28] sm:$0xff]
    %v120 = vld [vmem:[%s0 + $0x30] sm:$0xff]
    %v121 = vld [vmem:[%s0 + $0x38] sm:$0xff]
    %123 = vset.pattern.permute.xlu0 0
    %124 = vperm.xlu0 %123, %v114
    %v125 = vpop.permute.xlu0 %124
    %128 = vset.pattern.permute.xlu0 0
    %129 = vperm.xlu0 %128, %v115
    %v130 = vpop.permute.xlu0 %129
    %133 = vset.pattern.permute.xlu0 0
    %134 = vperm.xlu0 %133, %v116
    %v135 = vpop.permute.xlu0 %134
    %138 = vset.pattern.permute.xlu0 0
    %139 = vperm.xlu0 %138, %v117
    %v140 = vpop.permute.xlu0 %139
    %143 = vset.pattern.permute.xlu0 0
    %144 = vperm.xlu0 %143, %v118
    %v145 = vpop.permute.xlu0 %144
    %148 = vset.pattern.permute.xlu0 0
    %149 = vperm.xlu0 %148, %v119
    %v150 = vpop.permute.xlu0 %149
    %153 = vset.pattern.permute.xlu0 0
    %154 = vperm.xlu0 %153, %v120
    %v155 = vpop.permute.xlu0 %154
    %158 = vset.pattern.permute.xlu0 0
    %159 = vperm.xlu0 %158, %v121
    %v160 = vpop.permute.xlu0 %159
    %v163 = vperm.slane %v107, 0
    %v164 = vperm.slane %v107, 1
    %v165 = vperm.slane %v107, 2
    %v166 = vperm.slane %v107, 3
    %v171 = vmul.f32 %v125, %v163
    %v172 = vmul.f32 %v125, %v164
    %v173 = vmul.f32 %v125, %v165
    %v174 = vmul.f32 %v125, %v166
    %v175 = vmul.f32 %v130, %v163
    %v176 = vmul.f32 %v130, %v164
    %v177 = vmul.f32 %v130, %v165
    %v178 = vmul.f32 %v130, %v166
    %v179 = vmul.f32 %v135, %v163
    %v180 = vmul.f32 %v135, %v164
    %v181 = vmul.f32 %v135, %v165
    %v182 = vmul.f32 %v135, %v166
    %v183 = vmul.f32 %v140, %v163
    %v184 = vmul.f32 %v140, %v164
    %v185 = vmul.f32 %v140, %v165
    %v186 = vmul.f32 %v140, %v166
    %v187 = vmul.f32 %v145, %v163
    %v188 = vmul.f32 %v145, %v164
    %v189 = vmul.f32 %v145, %v165
    %v190 = vmul.f32 %v145, %v166
    %v191 = vmul.f32 %v150, %v163
    %v192 = vmul.f32 %v150, %v164
    %v193 = vmul.f32 %v150, %v165
    %v194 = vmul.f32 %v150, %v166
    %v195 = vmul.f32 %v155, %v163
    %v196 = vmul.f32 %v155, %v164
    %v197 = vmul.f32 %v155, %v165
    %v198 = vmul.f32 %v155, %v166
    %v199 = vmul.f32 %v160, %v163
    %v200 = vmul.f32 %v160, %v164
    %v201 = vmul.f32 %v160, %v165
    %v202 = vmul.f32 %v160, %v166
    %v204 = vperm.slane %v109, 0
    %v205 = vperm.slane %v109, 1
    %v206 = vperm.slane %v109, 2
    %v207 = vperm.slane %v109, 3
    %v212 = vadd.f32 %v171, %v204
    %v213 = vadd.f32 %v172, %v205
    %v214 = vadd.f32 %v173, %v206
    %v215 = vadd.f32 %v174, %v207
    %v216 = vadd.f32 %v175, %v204
    %v217 = vadd.f32 %v176, %v205
    %v218 = vadd.f32 %v177, %v206
    %v219 = vadd.f32 %v178, %v207
    %v220 = vadd.f32 %v179, %v204
    %v221 = vadd.f32 %v180, %v205
    %v222 = vadd.f32 %v181, %v206
    %v223 = vadd.f32 %v182, %v207
    %v224 = vadd.f32 %v183, %v204
    %v225 = vadd.f32 %v184, %v205
    %v226 = vadd.f32 %v185, %v206
    %v227 = vadd.f32 %v186, %v207
    %v228 = vadd.f32 %v187, %v204
    %v229 = vadd.f32 %v188, %v205
    %v230 = vadd.f32 %v189, %v206
    %v231 = vadd.f32 %v190, %v207
    %v232 = vadd.f32 %v191, %v204
    %v233 = vadd.f32 %v192, %v205
    %v234 = vadd.f32 %v193, %v206
    %v235 = vadd.f32 %v194, %v207
    %v236 = vadd.f32 %v195, %v204
    %v237 = vadd.f32 %v196, %v205
    %v238 = vadd.f32 %v197, %v206
    %v239 = vadd.f32 %v198, %v207
    %v240 = vadd.f32 %v199, %v204
    %v241 = vadd.f32 %v200, %v205
    %v242 = vadd.f32 %v201, %v206
    %v243 = vadd.f32 %v202, %v207
    %v244 = vxor.u32 %v212, 2147483648
    %v245 = vmul.f32 %v244, 1.442695
    %v246 = vpow.pop %v245
    %v247 = vadd.f32 %v246, 1.0
    %v248 = vrcp.pop %v247
    %v249 = vmul.f32 %v247, %v248
    %v250 = vsub.f32 1.0, %v249
    %v251 = vmul.f32 %v248, %v250
    %v252 = vadd.f32 %v248, %v251
    %vm253 = vweird.f32 %v247
    %vm254 = vweird.f32 %v248
    %vm255 = vmor %vm253, %vm254
    %v256 = vsel %vm255, %v248, %v252
    %v257 = vand.u32 2147483647, %v247
    %vm258 = vcmp.eq.f32.partialorder %v257, 8.507059e+37
    %v259 = vand.u32 %v247, 2147483648
    %v260 = vor.u32 1.1754944e-38, %v259
    %v261 = vsel %vm258, %v260, %v256
    %v262 = vmul.f32 1.0, %v261
    %v263 = vxor.u32 %v213, 2147483648
    %v264 = vmul.f32 %v263, 1.442695
    %v265 = vpow.pop %v264
    %v266 = vadd.f32 %v265, 1.0
    %v267 = vrcp.pop %v266
    %v268 = vmul.f32 %v266, %v267
    %v269 = vsub.f32 1.0, %v268
    %v270 = vmul.f32 %v267, %v269
    %v271 = vadd.f32 %v267, %v270
    %vm272 = vweird.f32 %v266
    %vm273 = vweird.f32 %v267
    %vm274 = vmor %vm272, %vm273
    %v275 = vsel %vm274, %v267, %v271
    %v276 = vand.u32 2147483647, %v266
    %vm277 = vcmp.eq.f32.partialorder %v276, 8.507059e+37
    %v278 = vand.u32 %v266, 2147483648
    %v279 = vor.u32 1.1754944e-38, %v278
    %v280 = vsel %vm277, %v279, %v275
    %v281 = vmul.f32 1.0, %v280
    %v282 = vtanh.pop %v214
    %v283 = vxor.u32 %v215, 2147483648
    %v284 = vmul.f32 %v283, 1.442695
    %v285 = vpow.pop %v284
    %v286 = vadd.f32 %v285, 1.0
    %v287 = vrcp.pop %v286
    %v288 = vmul.f32 %v286, %v287
    %v289 = vsub.f32 1.0, %v288
    %v290 = vmul.f32 %v287, %v289
    %v291 = vadd.f32 %v287, %v290
    %vm292 = vweird.f32 %v286
    %vm293 = vweird.f32 %v287
    %vm294 = vmor %vm292, %vm293
    %v295 = vsel %vm294, %v287, %v291
    %v296 = vand.u32 2147483647, %v286
    %vm297 = vcmp.eq.f32.partialorder %v296, 8.507059e+37
    %v298 = vand.u32 %v286, 2147483648
    %v299 = vor.u32 1.1754944e-38, %v298
    %v300 = vsel %vm297, %v299, %v295
    %v301 = vmul.f32 1.0, %v300
    %v302 = vmul.f32 %v281, 0.0
    %v303 = vmul.f32 %v262, %v282
    %v304 = vadd.f32 %v302, %v303
    %v305 = vtanh.pop %v304
    %v306 = vmul.f32 %v301, %v305
    %307 = vmatpush.msra.mxu0 %v102
    %308 = vmatpush.msra.mxu0 %v98
    %309 = vmatpush.msra.mxu0 %v94
    %310 = vmatpush.msra.mxu0 %v90
    %311 = vmatpush.msra.mxu0 %v86
    %312 = vmatpush.msra.mxu0 %v82
    %313 = vmatpush.msra.mxu0 %v78
    %314 = vmatpush.msra.mxu0 %v74
    %315 = vmatpush.msra.mxu0 %v70
    %316 = vmatpush.msra.mxu0 %v66
    %317 = vmatpush.msra.mxu0 %v62
    %318 = vmatpush.msra.mxu0 %v58
    %319 = vmatpush.msra.mxu0 %v54
    %320 = vmatpush.msra.mxu0 %v50
    %321 = vmatpush.msra.mxu0 %v46
    %322 = vmatpush.msra.mxu0 %v42
    %323 = vmatmul.f32.gmra.mxu0 %v306
    %v324 = vpop.f32.mrf.mxu0
    %v325 = vadd.f32 0.0, %v324
    %326 = vdwg.mxu0
    %327 = vmatpush.msra.mxu0 %v103
    %328 = vmatpush.msra.mxu0 %v99
    %329 = vmatpush.msra.mxu0 %v95
    %330 = vmatpush.msra.mxu0 %v91
    %331 = vmatpush.msra.mxu0 %v87
    %332 = vmatpush.msra.mxu0 %v83
    %333 = vmatpush.msra.mxu0 %v79
    %334 = vmatpush.msra.mxu0 %v75
    %335 = vmatpush.msra.mxu0 %v71
    %336 = vmatpush.msra.mxu0 %v67
    %337 = vmatpush.msra.mxu0 %v63
    %338 = vmatpush.msra.mxu0 %v59
    %339 = vmatpush.msra.mxu0 %v55
    %340 = vmatpush.msra.mxu0 %v51
    %341 = vmatpush.msra.mxu0 %v47
    %342 = vmatpush.msra.mxu0 %v43
    %343 = vmatmul.f32.gmra.mxu0 %v306
    %v344 = vpop.f32.mrf.mxu0
    %v345 = vadd.f32 0.0, %v344
    %346 = vdwg.mxu0
    %347 = vmatpush.msra.mxu0 %v104
    %348 = vmatpush.msra.mxu0 %v100
    %349 = vmatpush.msra.mxu0 %v96
    %350 = vmatpush.msra.mxu0 %v92
    %351 = vmatpush.msra.mxu0 %v88
    %352 = vmatpush.msra.mxu0 %v84
    %353 = vmatpush.msra.mxu0 %v80
    %354 = vmatpush.msra.mxu0 %v76
    %355 = vmatpush.msra.mxu0 %v72
    %356 = vmatpush.msra.mxu0 %v68
    %357 = vmatpush.msra.mxu0 %v64
    %358 = vmatpush.msra.mxu0 %v60
    %359 = vmatpush.msra.mxu0 %v56
    %360 = vmatpush.msra.mxu0 %v52
    %361 = vmatpush.msra.mxu0 %v48
    %362 = vmatpush.msra.mxu0 %v44
    %363 = vmatmul.f32.gmra.mxu0 %v306
    %v364 = vpop.f32.mrf.mxu0
    %v365 = vadd.f32 0.0, %v364
    %366 = vdwg.mxu0
    %367 = vmatpush.msra.mxu0 %v105
    %368 = vmatpush.msra.mxu0 %v101
    %369 = vmatpush.msra.mxu0 %v97
    %370 = vmatpush.msra.mxu0 %v93
    %371 = vmatpush.msra.mxu0 %v89
    %372 = vmatpush.msra.mxu0 %v85
    %373 = vmatpush.msra.mxu0 %v81
    %374 = vmatpush.msra.mxu0 %v77
    %375 = vmatpush.msra.mxu0 %v73
    %376 = vmatpush.msra.mxu0 %v69
    %377 = vmatpush.msra.mxu0 %v65
    %378 = vmatpush.msra.mxu0 %v61
    %379 = vmatpush.msra.mxu0 %v57
    %380 = vmatpush.msra.mxu0 %v53
    %381 = vmatpush.msra.mxu0 %v49
    %382 = vmatpush.msra.mxu0 %v45
    %383 = vmatmul.f32.gmra.mxu0 %v306
    %v384 = vpop.f32.mrf.mxu0
    %v385 = vadd.f32 0.0, %v384
    %386 = vdwg.mxu0
    %v387 = vadd.f32 %v216, %v325
    %v388 = vadd.f32 %v217, %v345
    %v389 = vadd.f32 %v218, %v365
    %v390 = vadd.f32 %v219, %v385
    %v391 = vxor.u32 %v387, 2147483648
    %v392 = vmul.f32 %v391, 1.442695
    %v393 = vpow.pop %v392
    %v394 = vadd.f32 %v393, 1.0
    %v395 = vrcp.pop %v394
    %v396 = vmul.f32 %v394, %v395
    %v397 = vsub.f32 1.0, %v396
    %v398 = vmul.f32 %v395, %v397
    %v399 = vadd.f32 %v395, %v398
    %vm400 = vweird.f32 %v394
    %vm401 = vweird.f32 %v395
    %vm402 = vmor %vm400, %vm401
    %v403 = vsel %vm402, %v395, %v399
    %v404 = vand.u32 2147483647, %v394
    %vm405 = vcmp.eq.f32.partialorder %v404, 8.507059e+37
    %v406 = vand.u32 %v394, 2147483648
    %v407 = vor.u32 1.1754944e-38, %v406
    %v408 = vsel %vm405, %v407, %v403
    %v409 = vmul.f32 1.0, %v408
    %v410 = vxor.u32 %v388, 2147483648
    %v411 = vmul.f32 %v410, 1.442695
    %v412 = vpow.pop %v411
    %v413 = vadd.f32 %v412, 1.0
    %v414 = vrcp.pop %v413
    %v415 = vmul.f32 %v413, %v414
    %v416 = vsub.f32 1.0, %v415
    %v417 = vmul.f32 %v414, %v416
    %v418 = vadd.f32 %v414, %v417
    %vm419 = vweird.f32 %v413
    %vm420 = vweird.f32 %v414
    %vm421 = vmor %vm419, %vm420
    %v422 = vsel %vm421, %v414, %v418
    %v423 = vand.u32 2147483647, %v413
    %vm424 = vcmp.eq.f32.partialorder %v423, 8.507059e+37
    %v425 = vand.u32 %v413, 2147483648
    %v426 = vor.u32 1.1754944e-38, %v425
    %v427 = vsel %vm424, %v426, %v422
    %v428 = vmul.f32 1.0, %v427
    %v429 = vtanh.pop %v389
    %v430 = vxor.u32 %v390, 2147483648
    %v431 = vmul.f32 %v430, 1.442695
    %v432 = vpow.pop %v431
    %v433 = vadd.f32 %v432, 1.0
    %v434 = vrcp.pop %v433
    %v435 = vmul.f32 %v433, %v434
    %v436 = vsub.f32 1.0, %v435
    %v437 = vmul.f32 %v434, %v436
    %v438 = vadd.f32 %v434, %v437
    %vm439 = vweird.f32 %v433
    %vm440 = vweird.f32 %v434
    %vm441 = vmor %vm439, %vm440
    %v442 = vsel %vm441, %v434, %v438
    %v443 = vand.u32 2147483647, %v433
    %vm444 = vcmp.eq.f32.partialorder %v443, 8.507059e+37
    %v445 = vand.u32 %v433, 2147483648
    %v446 = vor.u32 1.1754944e-38, %v445
    %v447 = vsel %vm444, %v446, %v442
    %v448 = vmul.f32 1.0, %v447
    %v449 = vmul.f32 %v428, %v304
    %v450 = vmul.f32 %v409, %v429
    %v451 = vadd.f32 %v449, %v450
    %v452 = vtanh.pop %v451
    %v453 = vmul.f32 %v448, %v452
    %454 = vmatpush.msra.mxu0 %v102
    %455 = vmatpush.msra.mxu0 %v98
    %456 = vmatpush.msra.mxu0 %v94
    %457 = vmatpush.msra.mxu0 %v90
    %458 = vmatpush.msra.mxu0 %v86
    %459 = vmatpush.msra.mxu0 %v82
    %460 = vmatpush.msra.mxu0 %v78
    %461 = vmatpush.msra.mxu0 %v74
    %462 = vmatpush.msra.mxu0 %v70
    %463 = vmatpush.msra.mxu0 %v66
    %464 = vmatpush.msra.mxu0 %v62
    %465 = vmatpush.msra.mxu0 %v58
    %466 = vmatpush.msra.mxu0 %v54
    %467 = vmatpush.msra.mxu0 %v50
    %468 = vmatpush.msra.mxu0 %v46
    %469 = vmatpush.msra.mxu0 %v42
    %470 = vmatmul.f32.gmra.mxu0 %v453
    %v471 = vpop.f32.mrf.mxu0
    %v472 = vadd.f32 0.0, %v471
    %473 = vdwg.mxu0
    %474 = vmatpush.msra.mxu0 %v103
    %475 = vmatpush.msra.mxu0 %v99
    %476 = vmatpush.msra.mxu0 %v95
    %477 = vmatpush.msra.mxu0 %v91
    %478 = vmatpush.msra.mxu0 %v87
    %479 = vmatpush.msra.mxu0 %v83
    %480 = vmatpush.msra.mxu0 %v79
    %481 = vmatpush.msra.mxu0 %v75
    %482 = vmatpush.msra.mxu0 %v71
    %483 = vmatpush.msra.mxu0 %v67
    %484 = vmatpush.msra.mxu0 %v63
    %485 = vmatpush.msra.mxu0 %v59
    %486 = vmatpush.msra.mxu0 %v55
    %487 = vmatpush.msra.mxu0 %v51
    %488 = vmatpush.msra.mxu0 %v47
    %489 = vmatpush.msra.mxu0 %v43
    %490 = vmatmul.f32.gmra.mxu0 %v453
    %v491 = vpop.f32.mrf.mxu0
    %v492 = vadd.f32 0.0, %v491
    %493 = vdwg.mxu0
    %494 = vmatpush.msra.mxu0 %v104
    %495 = vmatpush.msra.mxu0 %v100
    %496 = vmatpush.msra.mxu0 %v96
    %497 = vmatpush.msra.mxu0 %v92
    %498 = vmatpush.msra.mxu0 %v88
    %499 = vmatpush.msra.mxu0 %v84
    %500 = vmatpush.msra.mxu0 %v80
    %501 = vmatpush.msra.mxu0 %v76
    %502 = vmatpush.msra.mxu0 %v72
    %503 = vmatpush.msra.mxu0 %v68
    %504 = vmatpush.msra.mxu0 %v64
    %505 = vmatpush.msra.mxu0 %v60
    %506 = vmatpush.msra.mxu0 %v56
    %507 = vmatpush.msra.mxu0 %v52
    %508 = vmatpush.msra.mxu0 %v48
    %509 = vmatpush.msra.mxu0 %v44
    %510 = vmatmul.f32.gmra.mxu0 %v453
    %v511 = vpop.f32.mrf.mxu0
    %v512 = vadd.f32 0.0, %v511
    %513 = vdwg.mxu0
    %514 = vmatpush.msra.mxu0 %v105
    %515 = vmatpush.msra.mxu0 %v101
    %516 = vmatpush.msra.mxu0 %v97
    %517 = vmatpush.msra.mxu0 %v93
    %518 = vmatpush.msra.mxu0 %v89
    %519 = vmatpush.msra.mxu0 %v85
    %520 = vmatpush.msra.mxu0 %v81
    %521 = vmatpush.msra.mxu0 %v77
    %522 = vmatpush.msra.mxu0 %v73
    %523 = vmatpush.msra.mxu0 %v69
    %524 = vmatpush.msra.mxu0 %v65
    %525 = vmatpush.msra.mxu0 %v61
    %526 = vmatpush.msra.mxu0 %v57
    %527 = vmatpush.msra.mxu0 %v53
    %528 = vmatpush.msra.mxu0 %v49
    %529 = vmatpush.msra.mxu0 %v45
    %530 = vmatmul.f32.gmra.mxu0 %v453
    %v531 = vpop.f32.mrf.mxu0
    %v532 = vadd.f32 0.0, %v531
    %533 = vdwg.mxu0
    %v534 = vadd.f32 %v220, %v472
    %v535 = vadd.f32 %v221, %v492
    %v536 = vadd.f32 %v222, %v512
    %v537 = vadd.f32 %v223, %v532
    %v538 = vxor.u32 %v534, 2147483648
    %v539 = vmul.f32 %v538, 1.442695
    %v540 = vpow.pop %v539
    %v541 = vadd.f32 %v540, 1.0
    %v542 = vrcp.pop %v541
    %v543 = vmul.f32 %v541, %v542
    %v544 = vsub.f32 1.0, %v543
    %v545 = vmul.f32 %v542, %v544
    %v546 = vadd.f32 %v542, %v545
    %vm547 = vweird.f32 %v541
    %vm548 = vweird.f32 %v542
    %vm549 = vmor %vm547, %vm548
    %v550 = vsel %vm549, %v542, %v546
    %v551 = vand.u32 2147483647, %v541
    %vm552 = vcmp.eq.f32.partialorder %v551, 8.507059e+37
    %v553 = vand.u32 %v541, 2147483648
    %v554 = vor.u32 1.1754944e-38, %v553
    %v555 = vsel %vm552, %v554, %v550
    %v556 = vmul.f32 1.0, %v555
    %v557 = vxor.u32 %v535, 2147483648
    %v558 = vmul.f32 %v557, 1.442695
    %v559 = vpow.pop %v558
    %v560 = vadd.f32 %v559, 1.0
    %v561 = vrcp.pop %v560
    %v562 = vmul.f32 %v560, %v561
    %v563 = vsub.f32 1.0, %v562
    %v564 = vmul.f32 %v561, %v563
    %v565 = vadd.f32 %v561, %v564
    %vm566 = vweird.f32 %v560
    %vm567 = vweird.f32 %v561
    %vm568 = vmor %vm566, %vm567
    %v569 = vsel %vm568, %v561, %v565
    %v570 = vand.u32 2147483647, %v560
    %vm571 = vcmp.eq.f32.partialorder %v570, 8.507059e+37
    %v572 = vand.u32 %v560, 2147483648
    %v573 = vor.u32 1.1754944e-38, %v572
    %v574 = vsel %vm571, %v573, %v569
    %v575 = vmul.f32 1.0, %v574
    %v576 = vtanh.pop %v536
    %v577 = vxor.u32 %v537, 2147483648
    %v578 = vmul.f32 %v577, 1.442695
    %v579 = vpow.pop %v578
    %v580 = vadd.f32 %v579, 1.0
    %v581 = vrcp.pop %v580
    %v582 = vmul.f32 %v580, %v581
    %v583 = vsub.f32 1.0, %v582
    %v584 = vmul.f32 %v581, %v583
    %v585 = vadd.f32 %v581, %v584
    %vm586 = vweird.f32 %v580
    %vm587 = vweird.f32 %v581
    %vm588 = vmor %vm586, %vm587
    %v589 = vsel %vm588, %v581, %v585
    %v590 = vand.u32 2147483647, %v580
    %vm591 = vcmp.eq.f32.partialorder %v590, 8.507059e+37
    %v592 = vand.u32 %v580, 2147483648
    %v593 = vor.u32 1.1754944e-38, %v592
    %v594 = vsel %vm591, %v593, %v589
    %v595 = vmul.f32 1.0, %v594
    %v596 = vmul.f32 %v575, %v451
    %v597 = vmul.f32 %v556, %v576
    %v598 = vadd.f32 %v596, %v597
    %v599 = vtanh.pop %v598
    %v600 = vmul.f32 %v595, %v599
    %601 = vmatpush.msra.mxu0 %v102
    %602 = vmatpush.msra.mxu0 %v98
    %603 = vmatpush.msra.mxu0 %v94
    %604 = vmatpush.msra.mxu0 %v90
    %605 = vmatpush.msra.mxu0 %v86
    %606 = vmatpush.msra.mxu0 %v82
    %607 = vmatpush.msra.mxu0 %v78
    %608 = vmatpush.msra.mxu0 %v74
    %609 = vmatpush.msra.mxu0 %v70
    %610 = vmatpush.msra.mxu0 %v66
    %611 = vmatpush.msra.mxu0 %v62
    %612 = vmatpush.msra.mxu0 %v58
    %613 = vmatpush.msra.mxu0 %v54
    %614 = vmatpush.msra.mxu0 %v50
    %615 = vmatpush.msra.mxu0 %v46
    %616 = vmatpush.msra.mxu0 %v42
    %617 = vmatmul.f32.gmra.mxu0 %v600
    %v618 = vpop.f32.mrf.mxu0
    %v619 = vadd.f32 0.0, %v618
    %620 = vdwg.mxu0
    %621 = vmatpush.msra.mxu0 %v103
    %622 = vmatpush.msra.mxu0 %v99
    %623 = vmatpush.msra.mxu0 %v95
    %624 = vmatpush.msra.mxu0 %v91
    %625 = vmatpush.msra.mxu0 %v87
    %626 = vmatpush.msra.mxu0 %v83
    %627 = vmatpush.msra.mxu0 %v79
    %628 = vmatpush.msra.mxu0 %v75
    %629 = vmatpush.msra.mxu0 %v71
    %630 = vmatpush.msra.mxu0 %v67
    %631 = vmatpush.msra.mxu0 %v63
    %632 = vmatpush.msra.mxu0 %v59
    %633 = vmatpush.msra.mxu0 %v55
    %634 = vmatpush.msra.mxu0 %v51
    %635 = vmatpush.msra.mxu0 %v47
    %636 = vmatpush.msra.mxu0 %v43
    %637 = vmatmul.f32.gmra.mxu0 %v600
    %v638 = vpop.f32.mrf.mxu0
    %v639 = vadd.f32 0.0, %v638
    %640 = vdwg.mxu0
    %641 = vmatpush.msra.mxu0 %v104
    %642 = vmatpush.msra.mxu0 %v100
    %643 = vmatpush.msra.mxu0 %v96
    %644 = vmatpush.msra.mxu0 %v92
    %645 = vmatpush.msra.mxu0 %v88
    %646 = vmatpush.msra.mxu0 %v84
    %647 = vmatpush.msra.mxu0 %v80
    %648 = vmatpush.msra.mxu0 %v76
    %649 = vmatpush.msra.mxu0 %v72
    %650 = vmatpush.msra.mxu0 %v68
    %651 = vmatpush.msra.mxu0 %v64
    %652 = vmatpush.msra.mxu0 %v60
    %653 = vmatpush.msra.mxu0 %v56
    %654 = vmatpush.msra.mxu0 %v52
    %655 = vmatpush.msra.mxu0 %v48
    %656 = vmatpush.msra.mxu0 %v44
    %657 = vmatmul.f32.gmra.mxu0 %v600
    %v658 = vpop.f32.mrf.mxu0
    %v659 = vadd.f32 0.0, %v658
    %660 = vdwg.mxu0
    %661 = vmatpush.msra.mxu0 %v105
    %662 = vmatpush.msra.mxu0 %v101
    %663 = vmatpush.msra.mxu0 %v97
    %664 = vmatpush.msra.mxu0 %v93
    %665 = vmatpush.msra.mxu0 %v89
    %666 = vmatpush.msra.mxu0 %v85
    %667 = vmatpush.msra.mxu0 %v81
    %668 = vmatpush.msra.mxu0 %v77
    %669 = vmatpush.msra.mxu0 %v73
    %670 = vmatpush.msra.mxu0 %v69
    %671 = vmatpush.msra.mxu0 %v65
    %672 = vmatpush.msra.mxu0 %v61
    %673 = vmatpush.msra.mxu0 %v57
    %674 = vmatpush.msra.mxu0 %v53
    %675 = vmatpush.msra.mxu0 %v49
    %676 = vmatpush.msra.mxu0 %v45
    %677 = vmatmul.f32.gmra.mxu0 %v600
    %v678 = vpop.f32.mrf.mxu0
    %v679 = vadd.f32 0.0, %v678
    %680 = vdwg.mxu0
    %v681 = vadd.f32 %v224, %v619
    %v682 = vadd.f32 %v225, %v639
    %v683 = vadd.f32 %v226, %v659
    %v684 = vadd.f32 %v227, %v679
    %v685 = vxor.u32 %v681, 2147483648
    %v686 = vmul.f32 %v685, 1.442695
    %v687 = vpow.pop %v686
    %v688 = vadd.f32 %v687, 1.0
    %v689 = vrcp.pop %v688
    %v690 = vmul.f32 %v688, %v689
    %v691 = vsub.f32 1.0, %v690
    %v692 = vmul.f32 %v689, %v691
    %v693 = vadd.f32 %v689, %v692
    %vm694 = vweird.f32 %v688
    %vm695 = vweird.f32 %v689
    %vm696 = vmor %vm694, %vm695
    %v697 = vsel %vm696, %v689, %v693
    %v698 = vand.u32 2147483647, %v688
    %vm699 = vcmp.eq.f32.partialorder %v698, 8.507059e+37
    %v700 = vand.u32 %v688, 2147483648
    %v701 = vor.u32 1.1754944e-38, %v700
    %v702 = vsel %vm699, %v701, %v697
    %v703 = vmul.f32 1.0, %v702
    %v704 = vxor.u32 %v682, 2147483648
    %v705 = vmul.f32 %v704, 1.442695
    %v706 = vpow.pop %v705
    %v707 = vadd.f32 %v706, 1.0
    %v708 = vrcp.pop %v707
    %v709 = vmul.f32 %v707, %v708
    %v710 = vsub.f32 1.0, %v709
    %v711 = vmul.f32 %v708, %v710
    %v712 = vadd.f32 %v708, %v711
    %vm713 = vweird.f32 %v707
    %vm714 = vweird.f32 %v708
    %vm715 = vmor %vm713, %vm714
    %v716 = vsel %vm715, %v708, %v712
    %v717 = vand.u32 2147483647, %v707
    %vm718 = vcmp.eq.f32.partialorder %v717, 8.507059e+37
    %v719 = vand.u32 %v707, 2147483648
    %v720 = vor.u32 1.1754944e-38, %v719
    %v721 = vsel %vm718, %v720, %v716
    %v722 = vmul.f32 1.0, %v721
    %v723 = vtanh.pop %v683
    %v724 = vxor.u32 %v684, 2147483648
    %v725 = vmul.f32 %v724, 1.442695
    %v726 = vpow.pop %v725
    %v727 = vadd.f32 %v726, 1.0
    %v728 = vrcp.pop %v727
    %v729 = vmul.f32 %v727, %v728
    %v730 = vsub.f32 1.0, %v729
    %v731 = vmul.f32 %v728, %v730
    %v732 = vadd.f32 %v728, %v731
    %vm733 = vweird.f32 %v727
    %vm734 = vweird.f32 %v728
    %vm735 = vmor %vm733, %vm734
    %v736 = vsel %vm735, %v728, %v732
    %v737 = vand.u32 2147483647, %v727
    %vm738 = vcmp.eq.f32.partialorder %v737, 8.507059e+37
    %v739 = vand.u32 %v727, 2147483648
    %v740 = vor.u32 1.1754944e-38, %v739
    %v741 = vsel %vm738, %v740, %v736
    %v742 = vmul.f32 1.0, %v741
    %v743 = vmul.f32 %v722, %v598
    %v744 = vmul.f32 %v703, %v723
    %v745 = vadd.f32 %v743, %v744
    %v746 = vtanh.pop %v745
    %v747 = vmul.f32 %v742, %v746
    %748 = vmatpush.msra.mxu0 %v102
    %749 = vmatpush.msra.mxu0 %v98
    %750 = vmatpush.msra.mxu0 %v94
    %751 = vmatpush.msra.mxu0 %v90
    %752 = vmatpush.msra.mxu0 %v86
    %753 = vmatpush.msra.mxu0 %v82
    %754 = vmatpush.msra.mxu0 %v78
    %755 = vmatpush.msra.mxu0 %v74
    %756 = vmatpush.msra.mxu0 %v70
    %757 = vmatpush.msra.mxu0 %v66
    %758 = vmatpush.msra.mxu0 %v62
    %759 = vmatpush.msra.mxu0 %v58
    %760 = vmatpush.msra.mxu0 %v54
    %761 = vmatpush.msra.mxu0 %v50
    %762 = vmatpush.msra.mxu0 %v46
    %763 = vmatpush.msra.mxu0 %v42
    %764 = vmatmul.f32.gmra.mxu0 %v747
    %v765 = vpop.f32.mrf.mxu0
    %v766 = vadd.f32 0.0, %v765
    %767 = vdwg.mxu0
    %768 = vmatpush.msra.mxu0 %v103
    %769 = vmatpush.msra.mxu0 %v99
    %770 = vmatpush.msra.mxu0 %v95
    %771 = vmatpush.msra.mxu0 %v91
    %772 = vmatpush.msra.mxu0 %v87
    %773 = vmatpush.msra.mxu0 %v83
    %774 = vmatpush.msra.mxu0 %v79
    %775 = vmatpush.msra.mxu0 %v75
    %776 = vmatpush.msra.mxu0 %v71
    %777 = vmatpush.msra.mxu0 %v67
    %778 = vmatpush.msra.mxu0 %v63
    %779 = vmatpush.msra.mxu0 %v59
    %780 = vmatpush.msra.mxu0 %v55
    %781 = vmatpush.msra.mxu0 %v51
    %782 = vmatpush.msra.mxu0 %v47
    %783 = vmatpush.msra.mxu0 %v43
    %784 = vmatmul.f32.gmra.mxu0 %v747
    %v785 = vpop.f32.mrf.mxu0
    %v786 = vadd.f32 0.0, %v785
    %787 = vdwg.mxu0
    %788 = vmatpush.msra.mxu0 %v104
    %789 = vmatpush.msra.mxu0 %v100
    %790 = vmatpush.msra.mxu0 %v96
    %791 = vmatpush.msra.mxu0 %v92
    %792 = vmatpush.msra.mxu0 %v88
    %793 = vmatpush.msra.mxu0 %v84
    %794 = vmatpush.msra.mxu0 %v80
    %795 = vmatpush.msra.mxu0 %v76
    %796 = vmatpush.msra.mxu0 %v72
    %797 = vmatpush.msra.mxu0 %v68
    %798 = vmatpush.msra.mxu0 %v64
    %799 = vmatpush.msra.mxu0 %v60
    %800 = vmatpush.msra.mxu0 %v56
    %801 = vmatpush.msra.mxu0 %v52
    %802 = vmatpush.msra.mxu0 %v48
    %803 = vmatpush.msra.mxu0 %v44
    %804 = vmatmul.f32.gmra.mxu0 %v747
    %v805 = vpop.f32.mrf.mxu0
    %v806 = vadd.f32 0.0, %v805
    %807 = vdwg.mxu0
    %808 = vmatpush.msra.mxu0 %v105
    %809 = vmatpush.msra.mxu0 %v101
    %810 = vmatpush.msra.mxu0 %v97
    %811 = vmatpush.msra.mxu0 %v93
    %812 = vmatpush.msra.mxu0 %v89
    %813 = vmatpush.msra.mxu0 %v85
    %814 = vmatpush.msra.mxu0 %v81
    %815 = vmatpush.msra.mxu0 %v77
    %816 = vmatpush.msra.mxu0 %v73
    %817 = vmatpush.msra.mxu0 %v69
    %818 = vmatpush.msra.mxu0 %v65
    %819 = vmatpush.msra.mxu0 %v61
    %820 = vmatpush.msra.mxu0 %v57
    %821 = vmatpush.msra.mxu0 %v53
    %822 = vmatpush.msra.mxu0 %v49
    %823 = vmatpush.msra.mxu0 %v45
    %824 = vmatmul.f32.gmra.mxu0 %v747
    %v825 = vpop.f32.mrf.mxu0
    %v826 = vadd.f32 0.0, %v825
    %827 = vdwg.mxu0
    %v828 = vadd.f32 %v228, %v766
    %v829 = vadd.f32 %v229, %v786
    %v830 = vadd.f32 %v230, %v806
    %v831 = vadd.f32 %v231, %v826
    %v832 = vxor.u32 %v828, 2147483648
    %v833 = vmul.f32 %v832, 1.442695
    %v834 = vpow.pop %v833
    %v835 = vadd.f32 %v834, 1.0
    %v836 = vrcp.pop %v835
    %v837 = vmul.f32 %v835, %v836
    %v838 = vsub.f32 1.0, %v837
    %v839 = vmul.f32 %v836, %v838
    %v840 = vadd.f32 %v836, %v839
    %vm841 = vweird.f32 %v835
    %vm842 = vweird.f32 %v836
    %vm843 = vmor %vm841, %vm842
    %v844 = vsel %vm843, %v836, %v840
    %v845 = vand.u32 2147483647, %v835
    %vm846 = vcmp.eq.f32.partialorder %v845, 8.507059e+37
    %v847 = vand.u32 %v835, 2147483648
    %v848 = vor.u32 1.1754944e-38, %v847
    %v849 = vsel %vm846, %v848, %v844
    %v850 = vmul.f32 1.0, %v849
    %v851 = vxor.u32 %v829, 2147483648
    %v852 = vmul.f32 %v851, 1.442695
    %v853 = vpow.pop %v852
    %v854 = vadd.f32 %v853, 1.0
    %v855 = vrcp.pop %v854
    %v856 = vmul.f32 %v854, %v855
    %v857 = vsub.f32 1.0, %v856
    %v858 = vmul.f32 %v855, %v857
    %v859 = vadd.f32 %v855, %v858
    %vm860 = vweird.f32 %v854
    %vm861 = vweird.f32 %v855
    %vm862 = vmor %vm860, %vm861
    %v863 = vsel %vm862, %v855, %v859
    %v864 = vand.u32 2147483647, %v854
    %vm865 = vcmp.eq.f32.partialorder %v864, 8.507059e+37
    %v866 = vand.u32 %v854, 2147483648
    %v867 = vor.u32 1.1754944e-38, %v866
    %v868 = vsel %vm865, %v867, %v863
    %v869 = vmul.f32 1.0, %v868
    %v870 = vtanh.pop %v830
    %v871 = vxor.u32 %v831, 2147483648
    %v872 = vmul.f32 %v871, 1.442695
    %v873 = vpow.pop %v872
    %v874 = vadd.f32 %v873, 1.0
    %v875 = vrcp.pop %v874
    %v876 = vmul.f32 %v874, %v875
    %v877 = vsub.f32 1.0, %v876
    %v878 = vmul.f32 %v875, %v877
    %v879 = vadd.f32 %v875, %v878
    %vm880 = vweird.f32 %v874
    %vm881 = vweird.f32 %v875
    %vm882 = vmor %vm880, %vm881
    %v883 = vsel %vm882, %v875, %v879
    %v884 = vand.u32 2147483647, %v874
    %vm885 = vcmp.eq.f32.partialorder %v884, 8.507059e+37
    %v886 = vand.u32 %v874, 2147483648
    %v887 = vor.u32 1.1754944e-38, %v886
    %v888 = vsel %vm885, %v887, %v883
    %v889 = vmul.f32 1.0, %v888
    %v890 = vmul.f32 %v869, %v745
    %v891 = vmul.f32 %v850, %v870
    %v892 = vadd.f32 %v890, %v891
    %v893 = vtanh.pop %v892
    %v894 = vmul.f32 %v889, %v893
    %895 = vmatpush.msra.mxu0 %v102
    %896 = vmatpush.msra.mxu0 %v98
    %897 = vmatpush.msra.mxu0 %v94
    %898 = vmatpush.msra.mxu0 %v90
    %899 = vmatpush.msra.mxu0 %v86
    %900 = vmatpush.msra.mxu0 %v82
    %901 = vmatpush.msra.mxu0 %v78
    %902 = vmatpush.msra.mxu0 %v74
    %903 = vmatpush.msra.mxu0 %v70
    %904 = vmatpush.msra.mxu0 %v66
    %905 = vmatpush.msra.mxu0 %v62
    %906 = vmatpush.msra.mxu0 %v58
    %907 = vmatpush.msra.mxu0 %v54
    %908 = vmatpush.msra.mxu0 %v50
    %909 = vmatpush.msra.mxu0 %v46
    %910 = vmatpush.msra.mxu0 %v42
    %911 = vmatmul.f32.gmra.mxu0 %v894
    %v912 = vpop.f32.mrf.mxu0
    %v913 = vadd.f32 0.0, %v912
    %914 = vdwg.mxu0
    %915 = vmatpush.msra.mxu0 %v103
    %916 = vmatpush.msra.mxu0 %v99
    %917 = vmatpush.msra.mxu0 %v95
    %918 = vmatpush.msra.mxu0 %v91
    %919 = vmatpush.msra.mxu0 %v87
    %920 = vmatpush.msra.mxu0 %v83
    %921 = vmatpush.msra.mxu0 %v79
    %922 = vmatpush.msra.mxu0 %v75
    %923 = vmatpush.msra.mxu0 %v71
    %924 = vmatpush.msra.mxu0 %v67
    %925 = vmatpush.msra.mxu0 %v63
    %926 = vmatpush.msra.mxu0 %v59
    %927 = vmatpush.msra.mxu0 %v55
    %928 = vmatpush.msra.mxu0 %v51
    %929 = vmatpush.msra.mxu0 %v47
    %930 = vmatpush.msra.mxu0 %v43
    %931 = vmatmul.f32.gmra.mxu0 %v894
    %v932 = vpop.f32.mrf.mxu0
    %v933 = vadd.f32 0.0, %v932
    %934 = vdwg.mxu0
    %935 = vmatpush.msra.mxu0 %v104
    %936 = vmatpush.msra.mxu0 %v100
    %937 = vmatpush.msra.mxu0 %v96
    %938 = vmatpush.msra.mxu0 %v92
    %939 = vmatpush.msra.mxu0 %v88
    %940 = vmatpush.msra.mxu0 %v84
    %941 = vmatpush.msra.mxu0 %v80
    %942 = vmatpush.msra.mxu0 %v76
    %943 = vmatpush.msra.mxu0 %v72
    %944 = vmatpush.msra.mxu0 %v68
    %945 = vmatpush.msra.mxu0 %v64
    %946 = vmatpush.msra.mxu0 %v60
    %947 = vmatpush.msra.mxu0 %v56
    %948 = vmatpush.msra.mxu0 %v52
    %949 = vmatpush.msra.mxu0 %v48
    %950 = vmatpush.msra.mxu0 %v44
    %951 = vmatmul.f32.gmra.mxu0 %v894
    %v952 = vpop.f32.mrf.mxu0
    %v953 = vadd.f32 0.0, %v952
    %954 = vdwg.mxu0
    %955 = vmatpush.msra.mxu0 %v105
    %956 = vmatpush.msra.mxu0 %v101
    %957 = vmatpush.msra.mxu0 %v97
    %958 = vmatpush.msra.mxu0 %v93
    %959 = vmatpush.msra.mxu0 %v89
    %960 = vmatpush.msra.mxu0 %v85
    %961 = vmatpush.msra.mxu0 %v81
    %962 = vmatpush.msra.mxu0 %v77
    %963 = vmatpush.msra.mxu0 %v73
    %964 = vmatpush.msra.mxu0 %v69
    %965 = vmatpush.msra.mxu0 %v65
    %966 = vmatpush.msra.mxu0 %v61
    %967 = vmatpush.msra.mxu0 %v57
    %968 = vmatpush.msra.mxu0 %v53
    %969 = vmatpush.msra.mxu0 %v49
    %970 = vmatpush.msra.mxu0 %v45
    %971 = vmatmul.f32.gmra.mxu0 %v894
    %v972 = vpop.f32.mrf.mxu0
    %v973 = vadd.f32 0.0, %v972
    %974 = vdwg.mxu0
    %v975 = vadd.f32 %v232, %v913
    %v976 = vadd.f32 %v233, %v933
    %v977 = vadd.f32 %v234, %v953
    %v978 = vadd.f32 %v235, %v973
    %v979 = vxor.u32 %v975, 2147483648
    %v980 = vmul.f32 %v979, 1.442695
    %v981 = vpow.pop %v980
    %v982 = vadd.f32 %v981, 1.0
    %v983 = vrcp.pop %v982
    %v984 = vmul.f32 %v982, %v983
    %v985 = vsub.f32 1.0, %v984
    %v986 = vmul.f32 %v983, %v985
    %v987 = vadd.f32 %v983, %v986
    %vm988 = vweird.f32 %v982
    %vm989 = vweird.f32 %v983
    %vm990 = vmor %vm988, %vm989
    %v991 = vsel %vm990, %v983, %v987
    %v992 = vand.u32 2147483647, %v982
    %vm993 = vcmp.eq.f32.partialorder %v992, 8.507059e+37
    %v994 = vand.u32 %v982, 2147483648
    %v995 = vor.u32 1.1754944e-38, %v994
    %v996 = vsel %vm993, %v995, %v991
    %v997 = vmul.f32 1.0, %v996
    %v998 = vxor.u32 %v976, 2147483648
    %v999 = vmul.f32 %v998, 1.442695
    %v1000 = vpow.pop %v999
    %v1001 = vadd.f32 %v1000, 1.0
    %v1002 = vrcp.pop %v1001
    %v1003 = vmul.f32 %v1001, %v1002
    %v1004 = vsub.f32 1.0, %v1003
    %v1005 = vmul.f32 %v1002, %v1004
    %v1006 = vadd.f32 %v1002, %v1005
    %vm1007 = vweird.f32 %v1001
    %vm1008 = vweird.f32 %v1002
    %vm1009 = vmor %vm1007, %vm1008
    %v1010 = vsel %vm1009, %v1002, %v1006
    %v1011 = vand.u32 2147483647, %v1001
    %vm1012 = vcmp.eq.f32.partialorder %v1011, 8.507059e+37
    %v1013 = vand.u32 %v1001, 2147483648
    %v1014 = vor.u32 1.1754944e-38, %v1013
    %v1015 = vsel %vm1012, %v1014, %v1010
    %v1016 = vmul.f32 1.0, %v1015
    %v1017 = vtanh.pop %v977
    %v1018 = vxor.u32 %v978, 2147483648
    %v1019 = vmul.f32 %v1018, 1.442695
    %v1020 = vpow.pop %v1019
    %v1021 = vadd.f32 %v1020, 1.0
    %v1022 = vrcp.pop %v1021
    %v1023 = vmul.f32 %v1021, %v1022
    %v1024 = vsub.f32 1.0, %v1023
    %v1025 = vmul.f32 %v1022, %v1024
    %v1026 = vadd.f32 %v1022, %v1025
    %vm1027 = vweird.f32 %v1021
    %vm1028 = vweird.f32 %v1022
    %vm1029 = vmor %vm1027, %vm1028
    %v1030 = vsel %vm1029, %v1022, %v1026
    %v1031 = vand.u32 2147483647, %v1021
    %vm1032 = vcmp.eq.f32.partialorder %v1031, 8.507059e+37
    %v1033 = vand.u32 %v1021, 2147483648
    %v1034 = vor.u32 1.1754944e-38, %v1033
    %v1035 = vsel %vm1032, %v1034, %v1030
    %v1036 = vmul.f32 1.0, %v1035
    %v1037 = vmul.f32 %v1016, %v892
    %v1038 = vmul.f32 %v997, %v1017
    %v1039 = vadd.f32 %v1037, %v1038
    %v1040 = vtanh.pop %v1039
    %v1041 = vmul.f32 %v1036, %v1040
    %1042 = vmatpush.msra.mxu0 %v102
    %1043 = vmatpush.msra.mxu0 %v98
    %1044 = vmatpush.msra.mxu0 %v94
    %1045 = vmatpush.msra.mxu0 %v90
    %1046 = vmatpush.msra.mxu0 %v86
    %1047 = vmatpush.msra.mxu0 %v82
    %1048 = vmatpush.msra.mxu0 %v78
    %1049 = vmatpush.msra.mxu0 %v74
    %1050 = vmatpush.msra.mxu0 %v70
    %1051 = vmatpush.msra.mxu0 %v66
    %1052 = vmatpush.msra.mxu0 %v62
    %1053 = vmatpush.msra.mxu0 %v58
    %1054 = vmatpush.msra.mxu0 %v54
    %1055 = vmatpush.msra.mxu0 %v50
    %1056 = vmatpush.msra.mxu0 %v46
    %1057 = vmatpush.msra.mxu0 %v42
    %1058 = vmatmul.f32.gmra.mxu0 %v1041
    %v1059 = vpop.f32.mrf.mxu0
    %v1060 = vadd.f32 0.0, %v1059
    %1061 = vdwg.mxu0
    %1062 = vmatpush.msra.mxu0 %v103
    %1063 = vmatpush.msra.mxu0 %v99
    %1064 = vmatpush.msra.mxu0 %v95
    %1065 = vmatpush.msra.mxu0 %v91
    %1066 = vmatpush.msra.mxu0 %v87
    %1067 = vmatpush.msra.mxu0 %v83
    %1068 = vmatpush.msra.mxu0 %v79
    %1069 = vmatpush.msra.mxu0 %v75
    %1070 = vmatpush.msra.mxu0 %v71
    %1071 = vmatpush.msra.mxu0 %v67
    %1072 = vmatpush.msra.mxu0 %v63
    %1073 = vmatpush.msra.mxu0 %v59
    %1074 = vmatpush.msra.mxu0 %v55
    %1075 = vmatpush.msra.mxu0 %v51
    %1076 = vmatpush.msra.mxu0 %v47
    %1077 = vmatpush.msra.mxu0 %v43
    %1078 = vmatmul.f32.gmra.mxu0 %v1041
    %v1079 = vpop.f32.mrf.mxu0
    %v1080 = vadd.f32 0.0, %v1079
    %1081 = vdwg.mxu0
    %1082 = vmatpush.msra.mxu0 %v104
    %1083 = vmatpush.msra.mxu0 %v100
    %1084 = vmatpush.msra.mxu0 %v96
    %1085 = vmatpush.msra.mxu0 %v92
    %1086 = vmatpush.msra.mxu0 %v88
    %1087 = vmatpush.msra.mxu0 %v84
    %1088 = vmatpush.msra.mxu0 %v80
    %1089 = vmatpush.msra.mxu0 %v76
    %1090 = vmatpush.msra.mxu0 %v72
    %1091 = vmatpush.msra.mxu0 %v68
    %1092 = vmatpush.msra.mxu0 %v64
    %1093 = vmatpush.msra.mxu0 %v60
    %1094 = vmatpush.msra.mxu0 %v56
    %1095 = vmatpush.msra.mxu0 %v52
    %1096 = vmatpush.msra.mxu0 %v48
    %1097 = vmatpush.msra.mxu0 %v44
    %1098 = vmatmul.f32.gmra.mxu0 %v1041
    %v1099 = vpop.f32.mrf.mxu0
    %v1100 = vadd.f32 0.0, %v1099
    %1101 = vdwg.mxu0
    %1102 = vmatpush.msra.mxu0 %v105
    %1103 = vmatpush.msra.mxu0 %v101
    %1104 = vmatpush.msra.mxu0 %v97
    %1105 = vmatpush.msra.mxu0 %v93
    %1106 = vmatpush.msra.mxu0 %v89
    %1107 = vmatpush.msra.mxu0 %v85
    %1108 = vmatpush.msra.mxu0 %v81
    %1109 = vmatpush.msra.mxu0 %v77
    %1110 = vmatpush.msra.mxu0 %v73
    %1111 = vmatpush.msra.mxu0 %v69
    %1112 = vmatpush.msra.mxu0 %v65
    %1113 = vmatpush.msra.mxu0 %v61
    %1114 = vmatpush.msra.mxu0 %v57
    %1115 = vmatpush.msra.mxu0 %v53
    %1116 = vmatpush.msra.mxu0 %v49
    %1117 = vmatpush.msra.mxu0 %v45
    %1118 = vmatmul.f32.gmra.mxu0 %v1041
    %v1119 = vpop.f32.mrf.mxu0
    %v1120 = vadd.f32 0.0, %v1119
    %1121 = vdwg.mxu0
    %v1122 = vadd.f32 %v236, %v1060
    %v1123 = vadd.f32 %v237, %v1080
    %v1124 = vadd.f32 %v238, %v1100
    %v1125 = vadd.f32 %v239, %v1120
    %v1126 = vxor.u32 %v1122, 2147483648
    %v1127 = vmul.f32 %v1126, 1.442695
    %v1128 = vpow.pop %v1127
    %v1129 = vadd.f32 %v1128, 1.0
    %v1130 = vrcp.pop %v1129
    %v1131 = vmul.f32 %v1129, %v1130
    %v1132 = vsub.f32 1.0, %v1131
    %v1133 = vmul.f32 %v1130, %v1132
    %v1134 = vadd.f32 %v1130, %v1133
    %vm1135 = vweird.f32 %v1129
    %vm1136 = vweird.f32 %v1130
    %vm1137 = vmor %vm1135, %vm1136
    %v1138 = vsel %vm1137, %v1130, %v1134
    %v1139 = vand.u32 2147483647, %v1129
    %vm1140 = vcmp.eq.f32.partialorder %v1139, 8.507059e+37
    %v1141 = vand.u32 %v1129, 2147483648
    %v1142 = vor.u32 1.1754944e-38, %v1141
    %v1143 = vsel %vm1140, %v1142, %v1138
    %v1144 = vmul.f32 1.0, %v1143
    %v1145 = vxor.u32 %v1123, 2147483648
    %v1146 = vmul.f32 %v1145, 1.442695
    %v1147 = vpow.pop %v1146
    %v1148 = vadd.f32 %v1147, 1.0
    %v1149 = vrcp.pop %v1148
    %v1150 = vmul.f32 %v1148, %v1149
    %v1151 = vsub.f32 1.0, %v1150
    %v1152 = vmul.f32 %v1149, %v1151
    %v1153 = vadd.f32 %v1149, %v1152
    %vm1154 = vweird.f32 %v1148
    %vm1155 = vweird.f32 %v1149
    %vm1156 = vmor %vm1154, %vm1155
    %v1157 = vsel %vm1156, %v1149, %v1153
    %v1158 = vand.u32 2147483647, %v1148
    %vm1159 = vcmp.eq.f32.partialorder %v1158, 8.507059e+37
    %v1160 = vand.u32 %v1148, 2147483648
    %v1161 = vor.u32 1.1754944e-38, %v1160
    %v1162 = vsel %vm1159, %v1161, %v1157
    %v1163 = vmul.f32 1.0, %v1162
    %v1164 = vtanh.pop %v1124
    %v1165 = vxor.u32 %v1125, 2147483648
    %v1166 = vmul.f32 %v1165, 1.442695
    %v1167 = vpow.pop %v1166
    %v1168 = vadd.f32 %v1167, 1.0
    %v1169 = vrcp.pop %v1168
    %v1170 = vmul.f32 %v1168, %v1169
    %v1171 = vsub.f32 1.0, %v1170
    %v1172 = vmul.f32 %v1169, %v1171
    %v1173 = vadd.f32 %v1169, %v1172
    %vm1174 = vweird.f32 %v1168
    %vm1175 = vweird.f32 %v1169
    %vm1176 = vmor %vm1174, %vm1175
    %v1177 = vsel %vm1176, %v1169, %v1173
    %v1178 = vand.u32 2147483647, %v1168
    %vm1179 = vcmp.eq.f32.partialorder %v1178, 8.507059e+37
    %v1180 = vand.u32 %v1168, 2147483648
    %v1181 = vor.u32 1.1754944e-38, %v1180
    %v1182 = vsel %vm1179, %v1181, %v1177
    %v1183 = vmul.f32 1.0, %v1182
    %v1184 = vmul.f32 %v1163, %v1039
    %v1185 = vmul.f32 %v1144, %v1164
    %v1186 = vadd.f32 %v1184, %v1185
    %v1187 = vtanh.pop %v1186
    %v1188 = vmul.f32 %v1183, %v1187
    %1189 = vmatpush.msra.mxu0 %v102
    %1190 = vmatpush.msra.mxu0 %v98
    %1191 = vmatpush.msra.mxu0 %v94
    %1192 = vmatpush.msra.mxu0 %v90
    %1193 = vmatpush.msra.mxu0 %v86
    %1194 = vmatpush.msra.mxu0 %v82
    %1195 = vmatpush.msra.mxu0 %v78
    %1196 = vmatpush.msra.mxu0 %v74
    %1197 = vmatpush.msra.mxu0 %v70
    %1198 = vmatpush.msra.mxu0 %v66
    %1199 = vmatpush.msra.mxu0 %v62
    %1200 = vmatpush.msra.mxu0 %v58
    %1201 = vmatpush.msra.mxu0 %v54
    %1202 = vmatpush.msra.mxu0 %v50
    %1203 = vmatpush.msra.mxu0 %v46
    %1204 = vmatpush.msra.mxu0 %v42
    %1205 = vmatmul.f32.gmra.mxu0 %v1188
    %v1206 = vpop.f32.mrf.mxu0
    %v1207 = vadd.f32 0.0, %v1206
    %1208 = vdwg.mxu0
    %1209 = vmatpush.msra.mxu0 %v103
    %1210 = vmatpush.msra.mxu0 %v99
    %1211 = vmatpush.msra.mxu0 %v95
    %1212 = vmatpush.msra.mxu0 %v91
    %1213 = vmatpush.msra.mxu0 %v87
    %1214 = vmatpush.msra.mxu0 %v83
    %1215 = vmatpush.msra.mxu0 %v79
    %1216 = vmatpush.msra.mxu0 %v75
    %1217 = vmatpush.msra.mxu0 %v71
    %1218 = vmatpush.msra.mxu0 %v67
    %1219 = vmatpush.msra.mxu0 %v63
    %1220 = vmatpush.msra.mxu0 %v59
    %1221 = vmatpush.msra.mxu0 %v55
    %1222 = vmatpush.msra.mxu0 %v51
    %1223 = vmatpush.msra.mxu0 %v47
    %1224 = vmatpush.msra.mxu0 %v43
    %1225 = vmatmul.f32.gmra.mxu0 %v1188
    %v1226 = vpop.f32.mrf.mxu0
    %v1227 = vadd.f32 0.0, %v1226
    %1228 = vdwg.mxu0
    %1229 = vmatpush.msra.mxu0 %v104
    %1230 = vmatpush.msra.mxu0 %v100
    %1231 = vmatpush.msra.mxu0 %v96
    %1232 = vmatpush.msra.mxu0 %v92
    %1233 = vmatpush.msra.mxu0 %v88
    %1234 = vmatpush.msra.mxu0 %v84
    %1235 = vmatpush.msra.mxu0 %v80
    %1236 = vmatpush.msra.mxu0 %v76
    %1237 = vmatpush.msra.mxu0 %v72
    %1238 = vmatpush.msra.mxu0 %v68
    %1239 = vmatpush.msra.mxu0 %v64
    %1240 = vmatpush.msra.mxu0 %v60
    %1241 = vmatpush.msra.mxu0 %v56
    %1242 = vmatpush.msra.mxu0 %v52
    %1243 = vmatpush.msra.mxu0 %v48
    %1244 = vmatpush.msra.mxu0 %v44
    %1245 = vmatmul.f32.gmra.mxu0 %v1188
    %v1246 = vpop.f32.mrf.mxu0
    %v1247 = vadd.f32 0.0, %v1246
    %1248 = vdwg.mxu0
    %1249 = vmatpush.msra.mxu0 %v105
    %1250 = vmatpush.msra.mxu0 %v101
    %1251 = vmatpush.msra.mxu0 %v97
    %1252 = vmatpush.msra.mxu0 %v93
    %1253 = vmatpush.msra.mxu0 %v89
    %1254 = vmatpush.msra.mxu0 %v85
    %1255 = vmatpush.msra.mxu0 %v81
    %1256 = vmatpush.msra.mxu0 %v77
    %1257 = vmatpush.msra.mxu0 %v73
    %1258 = vmatpush.msra.mxu0 %v69
    %1259 = vmatpush.msra.mxu0 %v65
    %1260 = vmatpush.msra.mxu0 %v61
    %1261 = vmatpush.msra.mxu0 %v57
    %1262 = vmatpush.msra.mxu0 %v53
    %1263 = vmatpush.msra.mxu0 %v49
    %1264 = vmatpush.msra.mxu0 %v45
    %1265 = vmatmul.f32.gmra.mxu0 %v1188
    %v1266 = vpop.f32.mrf.mxu0
    %v1267 = vadd.f32 0.0, %v1266
    %1268 = vdwg.mxu0
    %v1269 = vadd.f32 %v240, %v1207
    %v1270 = vadd.f32 %v241, %v1227
    %v1271 = vadd.f32 %v242, %v1247
    %v1272 = vadd.f32 %v243, %v1267
    %v1273 = vxor.u32 %v1269, 2147483648
    %v1274 = vmul.f32 %v1273, 1.442695
    %v1275 = vpow.pop %v1274
    %v1276 = vadd.f32 %v1275, 1.0
    %v1277 = vrcp.pop %v1276
    %v1278 = vmul.f32 %v1276, %v1277
    %v1279 = vsub.f32 1.0, %v1278
    %v1280 = vmul.f32 %v1277, %v1279
    %v1281 = vadd.f32 %v1277, %v1280
    %vm1282 = vweird.f32 %v1276
    %vm1283 = vweird.f32 %v1277
    %vm1284 = vmor %vm1282, %vm1283
    %v1285 = vsel %vm1284, %v1277, %v1281
    %v1286 = vand.u32 2147483647, %v1276
    %vm1287 = vcmp.eq.f32.partialorder %v1286, 8.507059e+37
    %v1288 = vand.u32 %v1276, 2147483648
    %v1289 = vor.u32 1.1754944e-38, %v1288
    %v1290 = vsel %vm1287, %v1289, %v1285
    %v1291 = vmul.f32 1.0, %v1290
    %v1292 = vxor.u32 %v1270, 2147483648
    %v1293 = vmul.f32 %v1292, 1.442695
    %v1294 = vpow.pop %v1293
    %v1295 = vadd.f32 %v1294, 1.0
    %v1296 = vrcp.pop %v1295
    %v1297 = vmul.f32 %v1295, %v1296
    %v1298 = vsub.f32 1.0, %v1297
    %v1299 = vmul.f32 %v1296, %v1298
    %v1300 = vadd.f32 %v1296, %v1299
    %vm1301 = vweird.f32 %v1295
    %vm1302 = vweird.f32 %v1296
    %vm1303 = vmor %vm1301, %vm1302
    %v1304 = vsel %vm1303, %v1296, %v1300
    %v1305 = vand.u32 2147483647, %v1295
    %vm1306 = vcmp.eq.f32.partialorder %v1305, 8.507059e+37
    %v1307 = vand.u32 %v1295, 2147483648
    %v1308 = vor.u32 1.1754944e-38, %v1307
    %v1309 = vsel %vm1306, %v1308, %v1304
    %v1310 = vmul.f32 1.0, %v1309
    %v1311 = vtanh.pop %v1271
    %v1312 = vxor.u32 %v1272, 2147483648
    %v1313 = vmul.f32 %v1312, 1.442695
    %v1314 = vpow.pop %v1313
    %v1315 = vadd.f32 %v1314, 1.0
    %v1316 = vrcp.pop %v1315
    %v1317 = vmul.f32 %v1315, %v1316
    %v1318 = vsub.f32 1.0, %v1317
    %v1319 = vmul.f32 %v1316, %v1318
    %v1320 = vadd.f32 %v1316, %v1319
    %vm1321 = vweird.f32 %v1315
    %vm1322 = vweird.f32 %v1316
    %vm1323 = vmor %vm1321, %vm1322
    %v1324 = vsel %vm1323, %v1316, %v1320
    %v1325 = vand.u32 2147483647, %v1315
    %vm1326 = vcmp.eq.f32.partialorder %v1325, 8.507059e+37
    %v1327 = vand.u32 %v1315, 2147483648
    %v1328 = vor.u32 1.1754944e-38, %v1327
    %v1329 = vsel %vm1326, %v1328, %v1324
    %v1330 = vmul.f32 1.0, %v1329
    %v1331 = vmul.f32 %v1310, %v1186
    %v1332 = vmul.f32 %v1291, %v1311
    %v1333 = vadd.f32 %v1331, %v1332
    %v1334 = vtanh.pop %v1333
    %v1335 = vmul.f32 %v1330, %v1334
    %v1337 = vperm.slane %v111, 0
    %v1338 = vperm.slane %v111, 1
    %v1339 = vperm.slane %v111, 2
    %v1340 = vperm.slane %v111, 3
    %v1345 = vmul.f32 %v160, %v1337
    %v1346 = vmul.f32 %v160, %v1338
    %v1347 = vmul.f32 %v160, %v1339
    %v1348 = vmul.f32 %v160, %v1340
    %v1350 = vperm.slane %v113, 0
    %v1351 = vperm.slane %v113, 1
    %v1352 = vperm.slane %v113, 2
    %v1353 = vperm.slane %v113, 3
    %v1358 = vadd.f32 %v1345, %v1350
    %v1359 = vadd.f32 %v1346, %v1351
    %v1360 = vadd.f32 %v1347, %v1352
    %v1361 = vadd.f32 %v1348, %v1353
    %v1362 = vxor.u32 %v1358, 2147483648
    %v1363 = vmul.f32 %v1362, 1.442695
    %v1364 = vpow.pop %v1363
    %v1365 = vadd.f32 %v1364, 1.0
    %v1366 = vrcp.pop %v1365
    %v1367 = vmul.f32 %v1365, %v1366
    %v1368 = vsub.f32 1.0, %v1367
    %v1369 = vmul.f32 %v1366, %v1368
    %v1370 = vadd.f32 %v1366, %v1369
    %vm1371 = vweird.f32 %v1365
    %vm1372 = vweird.f32 %v1366
    %vm1373 = vmor %vm1371, %vm1372
    %v1374 = vsel %vm1373, %v1366, %v1370
    %v1375 = vand.u32 2147483647, %v1365
    %vm1376 = vcmp.eq.f32.partialorder %v1375, 8.507059e+37
    %v1377 = vand.u32 %v1365, 2147483648
    %v1378 = vor.u32 1.1754944e-38, %v1377
    %v1379 = vsel %vm1376, %v1378, %v1374
    %v1380 = vmul.f32 1.0, %v1379
    %v1381 = vxor.u32 %v1359, 2147483648
    %v1382 = vmul.f32 %v1381, 1.442695
    %v1383 = vpow.pop %v1382
    %v1384 = vadd.f32 %v1383, 1.0
    %v1385 = vrcp.pop %v1384
    %v1386 = vmul.f32 %v1384, %v1385
    %v1387 = vsub.f32 1.0, %v1386
    %v1388 = vmul.f32 %v1385, %v1387
    %v1389 = vadd.f32 %v1385, %v1388
    %vm1390 = vweird.f32 %v1384
    %vm1391 = vweird.f32 %v1385
    %vm1392 = vmor %vm1390, %vm1391
    %v1393 = vsel %vm1392, %v1385, %v1389
    %v1394 = vand.u32 2147483647, %v1384
    %vm1395 = vcmp.eq.f32.partialorder %v1394, 8.507059e+37
    %v1396 = vand.u32 %v1384, 2147483648
    %v1397 = vor.u32 1.1754944e-38, %v1396
    %v1398 = vsel %vm1395, %v1397, %v1393
    %v1399 = vmul.f32 1.0, %v1398
    %v1400 = vtanh.pop %v1360
    %v1401 = vxor.u32 %v1361, 2147483648
    %v1402 = vmul.f32 %v1401, 1.442695
    %v1403 = vpow.pop %v1402
    %v1404 = vadd.f32 %v1403, 1.0
    %v1405 = vrcp.pop %v1404
    %v1406 = vmul.f32 %v1404, %v1405
    %v1407 = vsub.f32 1.0, %v1406
    %v1408 = vmul.f32 %v1405, %v1407
    %v1409 = vadd.f32 %v1405, %v1408
    %vm1410 = vweird.f32 %v1404
    %vm1411 = vweird.f32 %v1405
    %vm1412 = vmor %vm1410, %vm1411
    %v1413 = vsel %vm1412, %v1405, %v1409
    %v1414 = vand.u32 2147483647, %v1404
    %vm1415 = vcmp.eq.f32.partialorder %v1414, 8.507059e+37
    %v1416 = vand.u32 %v1404, 2147483648
    %v1417 = vor.u32 1.1754944e-38, %v1416
    %v1418 = vsel %vm1415, %v1417, %v1413
    %v1419 = vmul.f32 1.0, %v1418
    %v1420 = vmul.f32 %v1399, 0.0
    %v1421 = vmul.f32 %v1380, %v1400
    %v1422 = vadd.f32 %v1420, %v1421
    %v1423 = vtanh.pop %v1422
    %v1424 = vmul.f32 %v1419, %v1423
    %s1425 = smul.u32 392, 1
    %s1426 = sshll.u32 %s1425, 4
    %1427 = dma.done [#allocation3], %s1426
    %v1428 = vld [vmem:[#allocation2] sm:$0xff]
    %v1429 = vld [vmem:[#allocation2 + $0x8] sm:$0xff]
    %v1430 = vld [vmem:[#allocation2 + $0x10] sm:$0xff]
    %v1431 = vld [vmem:[#allocation2 + $0x18] sm:$0xff]
    %v1432 = vld [vmem:[#allocation2 + $0x20] sm:$0xff]
    %v1433 = vld [vmem:[#allocation2 + $0x28] sm:$0xff]
    %v1434 = vld [vmem:[#allocation2 + $0x30] sm:$0xff]
    %v1435 = vld [vmem:[#allocation2 + $0x38] sm:$0xff]
    %v1436 = vld [vmem:[#allocation2 + $0x40] sm:$0xff]
    %v1437 = vld [vmem:[#allocation2 + $0x48] sm:$0xff]
    %v1438 = vld [vmem:[#allocation2 + $0x50] sm:$0xff]
    %v1439 = vld [vmem:[#allocation2 + $0x58] sm:$0xff]
    %v1440 = vld [vmem:[#allocation2 + $0x60] sm:$0xff]
    %v1441 = vld [vmem:[#allocation2 + $0x68] sm:$0xff]
    %v1442 = vld [vmem:[#allocation2 + $0x70] sm:$0xff]
    %v1443 = vld [vmem:[#allocation2 + $0x78] sm:$0xff]
    %v1444 = vld [vmem:[#allocation2 + $0x80] sm:$0xff]
    %v1445 = vld [vmem:[#allocation2 + $0x88] sm:$0xff]
    %v1446 = vld [vmem:[#allocation2 + $0x90] sm:$0xff]
    %v1447 = vld [vmem:[#allocation2 + $0x98] sm:$0xff]
    %v1448 = vld [vmem:[#allocation2 + $0xa0] sm:$0xff]
    %v1449 = vld [vmem:[#allocation2 + $0xa8] sm:$0xff]
    %v1450 = vld [vmem:[#allocation2 + $0xb0] sm:$0xff]
    %v1451 = vld [vmem:[#allocation2 + $0xb8] sm:$0xff]
    %v1452 = vld [vmem:[#allocation2 + $0xc0] sm:$0xff]
    %v1453 = vld [vmem:[#allocation2 + $0xc8] sm:$0xff]
    %v1454 = vld [vmem:[#allocation2 + $0xd0] sm:$0xff]
    %v1455 = vld [vmem:[#allocation2 + $0xd8] sm:$0xff]
    %v1456 = vld [vmem:[#allocation2 + $0xe0] sm:$0xff]
    %v1457 = vld [vmem:[#allocation2 + $0xe8] sm:$0xff]
    %v1458 = vld [vmem:[#allocation2 + $0xf0] sm:$0xff]
    %v1459 = vld [vmem:[#allocation2 + $0xf8] sm:$0xff]
    %v1460 = vld [vmem:[#allocation2 + $0x100] sm:$0xff]
    %v1461 = vld [vmem:[#allocation2 + $0x108] sm:$0xff]
    %v1462 = vld [vmem:[#allocation2 + $0x110] sm:$0xff]
    %v1463 = vld [vmem:[#allocation2 + $0x118] sm:$0xff]
    %v1464 = vld [vmem:[#allocation2 + $0x120] sm:$0xff]
    %v1465 = vld [vmem:[#allocation2 + $0x128] sm:$0xff]
    %v1466 = vld [vmem:[#allocation2 + $0x130] sm:$0xff]
    %v1467 = vld [vmem:[#allocation2 + $0x138] sm:$0xff]
    %v1468 = vld [vmem:[#allocation2 + $0x140] sm:$0xff]
    %v1469 = vld [vmem:[#allocation2 + $0x148] sm:$0xff]
    %v1470 = vld [vmem:[#allocation2 + $0x150] sm:$0xff]
    %v1471 = vld [vmem:[#allocation2 + $0x158] sm:$0xff]
    %v1472 = vld [vmem:[#allocation2 + $0x160] sm:$0xff]
    %v1473 = vld [vmem:[#allocation2 + $0x168] sm:$0xff]
    %v1474 = vld [vmem:[#allocation2 + $0x170] sm:$0xff]
    %v1475 = vld [vmem:[#allocation2 + $0x178] sm:$0xff]
    %v1476 = vld [vmem:[#allocation2 + $0x180] sm:$0x1]
    %v1477 = vld [vmem:[#allocation2 + $0x181] sm:$0x1]
    %v1478 = vperm.slane %v1476, 0
    %1479 = vmatpush.msra.mxu0 %v1443
    %1480 = vmatpush.msra.mxu0 %v1442
    %1481 = vmatpush.msra.mxu0 %v1441
    %1482 = vmatpush.msra.mxu0 %v1440
    %1483 = vmatpush.msra.mxu0 %v1439
    %1484 = vmatpush.msra.mxu0 %v1438
    %1485 = vmatpush.msra.mxu0 %v1437
    %1486 = vmatpush.msra.mxu0 %v1436
    %1487 = vmatpush.msra.mxu0 %v1435
    %1488 = vmatpush.msra.mxu0 %v1434
    %1489 = vmatpush.msra.mxu0 %v1433
    %1490 = vmatpush.msra.mxu0 %v1432
    %1491 = vmatpush.msra.mxu0 %v1431
    %1492 = vmatpush.msra.mxu0 %v1430
    %1493 = vmatpush.msra.mxu0 %v1429
    %1494 = vmatpush.msra.mxu0 %v1428
    %1495 = vmatmul.f32.gmra.mxu0 %v1335
    %v1496 = vpop.f32.mrf.mxu0
    %v1497 = vadd.f32 %v1478, %v1496
    %1498 = vdwg.mxu0
    %1499 = vmatpush.msra.mxu0 %v1459
    %1500 = vmatpush.msra.mxu0 %v1458
    %1501 = vmatpush.msra.mxu0 %v1457
    %1502 = vmatpush.msra.mxu0 %v1456
    %1503 = vmatpush.msra.mxu0 %v1455
    %1504 = vmatpush.msra.mxu0 %v1454
    %1505 = vmatpush.msra.mxu0 %v1453
    %1506 = vmatpush.msra.mxu0 %v1452
    %1507 = vmatpush.msra.mxu0 %v1451
    %1508 = vmatpush.msra.mxu0 %v1450
    %1509 = vmatpush.msra.mxu0 %v1449
    %1510 = vmatpush.msra.mxu0 %v1448
    %1511 = vmatpush.msra.mxu0 %v1447
    %1512 = vmatpush.msra.mxu0 %v1446
    %1513 = vmatpush.msra.mxu0 %v1445
    %1514 = vmatpush.msra.mxu0 %v1444
    %1515 = vmatmul.f32.gmra.mxu0 %v1424
    %v1516 = vpop.f32.mrf.mxu0
    %v1517 = vadd.f32 %v1497, %v1516
    %1518 = vdwg.mxu0
    %v1519 = vmax.f32 %v1517, 0.0
    %v1520 = vperm.slane %v1477, 0
    %1521 = vmatpush.msra.mxu0 %v1475
    %1522 = vmatpush.msra.mxu0 %v1474
    %1523 = vmatpush.msra.mxu0 %v1473
    %1524 = vmatpush.msra.mxu0 %v1472
    %1525 = vmatpush.msra.mxu0 %v1471
    %1526 = vmatpush.msra.mxu0 %v1470
    %1527 = vmatpush.msra.mxu0 %v1469
    %1528 = vmatpush.msra.mxu0 %v1468
    %1529 = vmatpush.msra.mxu0 %v1467
    %1530 = vmatpush.msra.mxu0 %v1466
    %1531 = vmatpush.msra.mxu0 %v1465
    %1532 = vmatpush.msra.mxu0 %v1464
    %1533 = vmatpush.msra.mxu0 %v1463
    %1534 = vmatpush.msra.mxu0 %v1462
    %1535 = vmatpush.msra.mxu0 %v1461
    %1536 = vmatpush.msra.mxu0 %v1460
    %1537 = vmatmul.f32.gmra.mxu0 %v1519
    %v1538 = vpop.f32.mrf.mxu0
    %v1539 = vadd.f32 %v1520, %v1538
    %1540 = vdwg.mxu0
    %v1541 = vxor.u32 %v1539, 2147483648
    %v1542 = vmul.f32 %v1541, 1.442695
    %v1543 = vpow.pop %v1542
    %v1544 = vadd.f32 %v1543, 1.0
    %v1545 = vrcp.pop %v1544
    %v1546 = vmul.f32 %v1544, %v1545
    %v1547 = vsub.f32 1.0, %v1546
    %v1548 = vmul.f32 %v1545, %v1547
    %v1549 = vadd.f32 %v1545, %v1548
    %vm1550 = vweird.f32 %v1544
    %vm1551 = vweird.f32 %v1545
    %vm1552 = vmor %vm1550, %vm1551
    %v1553 = vsel %vm1552, %v1545, %v1549
    %v1554 = vand.u32 2147483647, %v1544
    %vm1555 = vcmp.eq.f32.partialorder %v1554, 8.507059e+37
    %v1556 = vand.u32 %v1544, 2147483648
    %v1557 = vor.u32 1.1754944e-38, %v1556
    %v1558 = vsel %vm1555, %v1557, %v1553
    %v1559 = vmul.f32 1.0, %v1558
    %1560 = vst [vmem:[#allocation7] sm:$0xff] %v1559
    // Predicated region
    $region18: #{tpu_custom_call.1} parent=1 // pred_check
      _
    $region19: #{tpu_custom_call.1} parent=1 // pred_check_branch
      %1562 = sbr.rel (0) target = $region21
    $region20: #{tpu_custom_call.1} parent=1 // pred_region
      %1564 = vsyncadd [#allocation6], 0
      %s1566 = sshll.u32 [#allocation7], 4
      %s1567 = int_to_ptr.vmem [resolvable:$true] %s1566
      %s1568 = sshll.u32 %s3, 4
      %s1569 = int_to_ptr.hbm [resolvable:$true] %s1568
      %1571 = dma.vmem_to_hbm [thread:$0]  %s1567, 128, %s1569, [#allocation6]
    $region21: #{tpu_custom_call.1} parent=1 // pred_fallthru
      _
    // Predicated region
    $region22: #{tpu_custom_call.1} parent=1 // pred_check
      _
    $region23: #{tpu_custom_call.1} parent=1 // pred_check_branch
      %1573 = sbr.rel (0) target = $region25
    $region24: #{tpu_custom_call.1} parent=1 // pred_region
      %1575 = dma.done [#allocation6], 128
    $region25: #{tpu_custom_call.1} parent=1 // pred_fallthru
      _
    %1576 = vsyncpa [#allocation5], 1
    %1577 = vsyncpa [#allocation6], 1
  %1578 = vsyncmov [#allocation3]
  %s1579 = vpop.sfrf %1578
  %p1580 = scmp.eq.s32.totalorder %s1579, 0
  %p1581 = pneg %p1580
  %1583 = shalt.err (%p1581)

</llo_original>
